<compile_context>
chip_gen: v6e
topology: v6e:2x2x1
jax: 0.10.0
libtpu: 0.0.40
codegen_flags: <defaults>
</compile_context>

<pallas_src>
import math

import jax
import jax.numpy as jnp
from jax import lax
from jax.experimental import pallas as pl
from jax.experimental.pallas import tpu as pltpu


# --------------------------------------------------------------------------
# Fused kernel: projections + correlation softmax + aggregation + output_proj
# --------------------------------------------------------------------------
def _fused_aggregator_kernel(gx_ref, rx_ref, wg_ref, bg_ref, wr_ref, br_ref,
                             centers_ref, rbar_ref, wout_ref, bout_ref,
                             yg_ref, yr_ref, ya_ref):
    Bb, M, Dg = gx_ref.shape
    _, P, Dr = rx_ref.shape
    K, H = centers_ref.shape

    bf16 = jnp.bfloat16
    f32 = jnp.float32

    # Flatten the batch block so the MXU sees tall (Bb*M, Dg) tiles.
    gx = gx_ref[...].reshape(Bb * M, Dg).astype(bf16)
    rx = rx_ref[...].reshape(Bb * P, Dr).astype(bf16)
    wg = wg_ref[...].astype(bf16)
    wr = wr_ref[...].astype(bf16)
    wout = wout_ref[...].astype(bf16)
    centers = centers_ref[...].astype(bf16)
    bg = bg_ref[...]
    br = br_ref[...]
    bout = bout_ref[...]
    rbar = rbar_ref[...]

    # grid_proj / region_proj (bf16 operands, f32 accumulate)
    gp = jnp.dot(gx, wg, preferred_element_type=f32) + bg          # (Bb*M, H)
    rp = jnp.dot(rx, wr, preferred_element_type=f32) + br          # (Bb*P, H)

    # Correlation logits vs cluster centers (eq. 9).  The scalar grid/region
    # biases are omitted: a constant added to every logit is invisible to the
    # softmax in the forward pass.
    scores = lax.dot_general(gp.astype(bf16), centers,
                             (((1,), (1,)), ((), ())),
                             preferred_element_type=f32)            # (Bb*M, K)
    scores = scores - jnp.max(scores, axis=-1, keepdims=True)
    e = jnp.exp(scores)
    w = e * pl.reciprocal(jnp.sum(e, axis=-1, keepdims=True), approx=True)

    centered = gp - rbar                                            # (Bb*M, H)

    # Fused output projection for the grid / region nodes.
    yg = jnp.dot(gp.astype(bf16), wout, preferred_element_type=f32) + bout
    yr = jnp.dot(rp.astype(bf16), wout, preferred_element_type=f32) + bout
    yg_ref[...] = yg.reshape(Bb, M, H).astype(yg_ref.dtype)
    yr_ref[...] = yr.reshape(Bb, P, H).astype(yr_ref.dtype)

    # Per-batch aggregation (eq. 10) + L2-normalize + fused output projection.
    # Static unroll over the small batch block; the aggregation dot is tiny
    # (M x K x H) so it stays in f32.
    for b in range(Bb):
        wb = w[b * M:(b + 1) * M]                                    # (M, K)
        cb = centered[b * M:(b + 1) * M]                             # (M, H)
        agg = lax.dot_general(wb, cb, (((0,), (0,)), ((), ())),
                              preferred_element_type=f32)            # (K, H)
        sumsq = jnp.sum(agg * agg, axis=-1, keepdims=True)
        agg = agg * lax.rsqrt(jnp.maximum(sumsq, 1e-24))             # L2 norm
        ya = jnp.dot(agg.astype(bf16), wout,
                     preferred_element_type=f32) + bout              # (K, H)
        ya_ref[b] = ya.astype(ya_ref.dtype)


def region_grid_aggregate(grid_x, region_x, params, *, block_b=2):
    B, M, Dg = grid_x.shape
    _, P, Dr = region_x.shape
    K, H = params["centers"].shape

    if B % block_b != 0:
        block_b = math.gcd(B, block_b) or 1
    nb = B // block_b

    const2 = lambda i: (0, 0)

    out_shapes = (
        jax.ShapeDtypeStruct((B, M, H), jnp.float32),
        jax.ShapeDtypeStruct((B, P, H), jnp.float32),
        jax.ShapeDtypeStruct((B, K, H), jnp.float32),
    )
    return pl.pallas_call(
        _fused_aggregator_kernel,
        grid=(nb,),
        in_specs=[
            pl.BlockSpec((block_b, M, Dg), lambda i: (i, 0, 0)),
            pl.BlockSpec((block_b, P, Dr), lambda i: (i, 0, 0)),
            pl.BlockSpec((Dg, H), const2),
            pl.BlockSpec((1, H), const2),
            pl.BlockSpec((Dr, H), const2),
            pl.BlockSpec((1, H), const2),
            pl.BlockSpec((K, H), const2),
            pl.BlockSpec((1, H), const2),
            pl.BlockSpec((H, H), const2),
            pl.BlockSpec((1, H), const2),
        ],
        out_specs=[
            pl.BlockSpec((block_b, M, H), lambda i: (i, 0, 0)),
            pl.BlockSpec((block_b, P, H), lambda i: (i, 0, 0)),
            pl.BlockSpec((block_b, K, H), lambda i: (i, 0, 0)),
        ],
        out_shape=out_shapes,
        compiler_params=pltpu.CompilerParams(
            dimension_semantics=("parallel",),
            vmem_limit_bytes=32 * 1024 * 1024,   # well under the v7x 64 MiB
        ),
    )(grid_x, region_x,
      params["wg"], params["bg"], params["wr"], params["br"],
      params["centers"], params["rbar"], params["wout"], params["bout"])


# --------------------------------------------------------------------------
# Forward wrapper
# --------------------------------------------------------------------------
def forward(grid_features, region_features, params, *, block_b=2):
    # TODO(synk): graph construction + TransformerConv GNN layers + LayerNorm /
    # dropout residuals skipped (dynamic, data-dependent edge counts); the
    # fused kernel applies output_proj directly to the aggregator outputs.
    return region_grid_aggregate(grid_features, region_features, params,
                                 block_b=block_b)


# --------------------------------------------------------------------------
# Deterministic parameter init (mirrors shapes of the PyTorch module)
# --------------------------------------------------------------------------
def init_params(key, Dg, Dr, H, K):
    ks = jax.random.split(key, 8)

    def lin_w(k, fan_in, fan_out):
        bound = 1.0 / math.sqrt(fan_in)
        return jax.random.uniform(k, (fan_in, fan_out), jnp.float32, -bound, bound)

    def lin_b(k, fan_in, fan_out):
        bound = 1.0 / math.sqrt(fan_in)
        return jax.random.uniform(k, (1, fan_out), jnp.float32, -bound, bound)

    xav_c = math.sqrt(6.0 / (K + H))
    xav_r = math.sqrt(6.0 / (1 + H))
    # grid_bias / region_bias omitted: shared scalars added to every softmax
    # logit are a forward-pass no-op.
    return {
        "wg": lin_w(ks[0], Dg, H),
        "bg": lin_b(ks[1], Dg, H),
        "wr": lin_w(ks[2], Dr, H),
        "br": lin_b(ks[3], Dr, H),
        "centers": jax.random.uniform(ks[4], (K, H), jnp.float32, -xav_c, xav_c),
        "rbar": jax.random.uniform(ks[5], (1, H), jnp.float32, -xav_r, xav_r),
        "wout": lin_w(ks[6], H, H),
        "bout": lin_b(ks[7], H, H),
    }


# --------------------------------------------------------------------------
# Pure-JAX reference (same bf16 operand rounding for the big matmuls)
# --------------------------------------------------------------------------
def reference(grid_x, region_x, p):
    f32, bf16 = jnp.float32, jnp.bfloat16
    B, M, Dg = grid_x.shape
    P, Dr = region_x.shape[1], region_x.shape[2]
    K, H = p["centers"].shape

    def bdot(a, b):
        return jnp.dot(a.astype(bf16), b.astype(bf16), preferred_element_type=f32)

    gp = bdot(grid_x.reshape(-1, Dg), p["wg"]).reshape(B, M, H) + p["bg"]
    rp = bdot(region_x.reshape(-1, Dr), p["wr"]).reshape(B, P, H) + p["br"]

    scores = jnp.einsum("bmh,kh->bmk", gp.astype(bf16), p["centers"].astype(bf16),
                        preferred_element_type=f32)
    w = jax.nn.softmax(scores, axis=-1)
    centered = gp - p["rbar"]
    agg = jnp.einsum("bmk,bmh->bkh", w, centered)
    agg = agg / jnp.maximum(jnp.linalg.norm(agg, axis=-1, keepdims=True), 1e-12)

    yg = bdot(gp.reshape(-1, H), p["wout"]).reshape(B, M, H) + p["bout"]
    yr = bdot(rp.reshape(-1, H), p["wout"]).reshape(B, P, H) + p["bout"]
    ya = bdot(agg.reshape(-1, H), p["wout"]).reshape(B, K, H) + p["bout"]
    return yg, yr, ya


if __name__ == "__main__":
    key = jax.random.PRNGKey(0)
    B, M, P = 8, 16, 8           # M = 16 -> 4x4 spatial grid
    Dg, Dr, H, K = 128, 256, 128, 10   # H multiple of 128 -> lane-dense stores

    k0, k1, k2 = jax.random.split(key, 3)
    grid_features = jax.random.normal(k0, (B, M, Dg), jnp.float32)
    region_features = jax.random.normal(k1, (B, P, Dr), jnp.float32)
    params = init_params(k2, Dg, Dr, H, K)

    out = forward(grid_features, region_features, params, block_b=2)
    out = jax.block_until_ready(out)

    ref = reference(grid_features, region_features, params)
    for o, r in zip(out, ref):
        assert o.shape == r.shape
        err = float(jnp.max(jnp.abs(o - r)))
        assert err < 5e-3, f"max abs err {err}"

    print("KERNEL_OK")
</pallas_src>

<mosaic_0001>
module attributes {stable_mosaic.version = 11 : i64} {
  func.func @_fused_aggregator_kernel(%arg0: i32, %arg1: memref<2x16x128xf32, #tpu.memory_space<vmem>>, %arg2: memref<2x8x256xf32, #tpu.memory_space<vmem>>, %arg3: memref<128x128xf32, #tpu.memory_space<vmem>>, %arg4: memref<1x128xf32, #tpu.memory_space<vmem>>, %arg5: memref<256x128xf32, #tpu.memory_space<vmem>>, %arg6: memref<1x128xf32, #tpu.memory_space<vmem>>, %arg7: memref<10x128xf32, #tpu.memory_space<vmem>>, %arg8: memref<1x128xf32, #tpu.memory_space<vmem>>, %arg9: memref<128x128xf32, #tpu.memory_space<vmem>>, %arg10: memref<1x128xf32, #tpu.memory_space<vmem>>, %arg11: memref<2x16x128xf32, #tpu.memory_space<vmem>>, %arg12: memref<2x8x128xf32, #tpu.memory_space<vmem>>, %arg13: memref<2x10x128xf32, #tpu.memory_space<vmem>>) attributes {dimension_semantics = [#tpu.dimension_semantics<parallel>], iteration_bounds = array<i64: 4>, scalar_prefetch = 0 : i64, scratch_operands = 0 : i64, tpu.core_type = #tpu.core_type<tc>, window_params = [{transform_indices = @transform_0, window_bounds = array<i64: 2, 16, 128>}, {transform_indices = @transform_1, window_bounds = array<i64: 2, 8, 256>}, {pipeline_mode = #tpu.pipeline_mode<synchronous>, transform_indices = @transform_2, window_bounds = array<i64: 128, 128>}, {pipeline_mode = #tpu.pipeline_mode<synchronous>, transform_indices = @transform_3, window_bounds = array<i64: 1, 128>}, {pipeline_mode = #tpu.pipeline_mode<synchronous>, transform_indices = @transform_4, window_bounds = array<i64: 256, 128>}, {pipeline_mode = #tpu.pipeline_mode<synchronous>, transform_indices = @transform_5, window_bounds = array<i64: 1, 128>}, {pipeline_mode = #tpu.pipeline_mode<synchronous>, transform_indices = @transform_6, window_bounds = array<i64: 10, 128>}, {pipeline_mode = #tpu.pipeline_mode<synchronous>, transform_indices = @transform_7, window_bounds = array<i64: 1, 128>}, {pipeline_mode = #tpu.pipeline_mode<synchronous>, transform_indices = @transform_8, window_bounds = array<i64: 128, 128>}, {pipeline_mode = #tpu.pipeline_mode<synchronous>, transform_indices = @transform_9, window_bounds = array<i64: 1, 128>}, {transform_indices = @transform_10, window_bounds = array<i64: 2, 16, 128>}, {transform_indices = @transform_11, window_bounds = array<i64: 2, 8, 128>}, {transform_indices = @transform_12, window_bounds = array<i64: 2, 10, 128>}]} {
    %c0 = arith.constant 0 : index
    %c0_0 = arith.constant 0 : index
    %c0_1 = arith.constant 0 : index
    %0 = vector.load %arg1[%c0, %c0_0, %c0_1] : memref<2x16x128xf32, #tpu.memory_space<vmem>>, vector<2x16x128xf32>
    %1 = vector.shape_cast %0 : vector<2x16x128xf32> to vector<32x128xf32>
    %2 = arith.truncf %1 : vector<32x128xf32> to vector<32x128xbf16>
    %c0_2 = arith.constant 0 : index
    %c0_3 = arith.constant 0 : index
    %c0_4 = arith.constant 0 : index
    %3 = vector.load %arg2[%c0_2, %c0_3, %c0_4] : memref<2x8x256xf32, #tpu.memory_space<vmem>>, vector<2x8x256xf32>
    %4 = vector.shape_cast %3 : vector<2x8x256xf32> to vector<16x256xf32>
    %5 = arith.truncf %4 : vector<16x256xf32> to vector<16x256xbf16>
    %c0_5 = arith.constant 0 : index
    %c0_6 = arith.constant 0 : index
    %6 = vector.load %arg3[%c0_5, %c0_6] : memref<128x128xf32, #tpu.memory_space<vmem>>, vector<128x128xf32>
    %7 = arith.truncf %6 : vector<128x128xf32> to vector<128x128xbf16>
    %c0_7 = arith.constant 0 : index
    %c0_8 = arith.constant 0 : index
    %8 = vector.load %arg5[%c0_7, %c0_8] : memref<256x128xf32, #tpu.memory_space<vmem>>, vector<256x128xf32>
    %9 = arith.truncf %8 : vector<256x128xf32> to vector<256x128xbf16>
    %c0_9 = arith.constant 0 : index
    %c0_10 = arith.constant 0 : index
    %10 = vector.load %arg9[%c0_9, %c0_10] : memref<128x128xf32, #tpu.memory_space<vmem>>, vector<128x128xf32>
    %11 = arith.truncf %10 : vector<128x128xf32> to vector<128x128xbf16>
    %c0_11 = arith.constant 0 : index
    %c0_12 = arith.constant 0 : index
    %12 = vector.load %arg7[%c0_11, %c0_12] : memref<10x128xf32, #tpu.memory_space<vmem>>, vector<10x128xf32>
    %13 = arith.truncf %12 : vector<10x128xf32> to vector<10x128xbf16>
    %c0_13 = arith.constant 0 : index
    %c0_14 = arith.constant 0 : index
    %14 = vector.load %arg4[%c0_13, %c0_14] : memref<1x128xf32, #tpu.memory_space<vmem>>, vector<1x128xf32>
    %c0_15 = arith.constant 0 : index
    %c0_16 = arith.constant 0 : index
    %15 = vector.load %arg6[%c0_15, %c0_16] : memref<1x128xf32, #tpu.memory_space<vmem>>, vector<1x128xf32>
    %c0_17 = arith.constant 0 : index
    %c0_18 = arith.constant 0 : index
    %16 = vector.load %arg10[%c0_17, %c0_18] : memref<1x128xf32, #tpu.memory_space<vmem>>, vector<1x128xf32>
    %c0_19 = arith.constant 0 : index
    %c0_20 = arith.constant 0 : index
    %17 = vector.load %arg8[%c0_19, %c0_20] : memref<1x128xf32, #tpu.memory_space<vmem>>, vector<1x128xf32>
    %cst = arith.constant dense<0.000000e+00> : vector<32x128xf32>
    %18 = tpu.matmul %2, %7, %cst {dimension_numbers = #tpu.dot_dimension_numbers<[1], [0], [0], [1], [0, 0, 1, 1], [], []>} : vector<32x128xbf16>, vector<128x128xbf16>, vector<32x128xf32> -> vector<32x128xf32>
    %19 = vector.broadcast %14 : vector<1x128xf32> to vector<32x128xf32>
    %20 = arith.addf %18, %19 : vector<32x128xf32>
    %cst_21 = arith.constant dense<0.000000e+00> : vector<16x128xf32>
    %21 = tpu.matmul %5, %9, %cst_21 {dimension_numbers = #tpu.dot_dimension_numbers<[1], [0], [0], [1], [0, 0, 1, 1], [], []>} : vector<16x256xbf16>, vector<256x128xbf16>, vector<16x128xf32> -> vector<16x128xf32>
    %22 = vector.broadcast %15 : vector<1x128xf32> to vector<16x128xf32>
    %23 = arith.addf %21, %22 : vector<16x128xf32>
    %24 = arith.truncf %20 : vector<32x128xf32> to vector<32x128xbf16>
    %cst_22 = arith.constant dense<0.000000e+00> : vector<32x10xf32>
    %25 = tpu.matmul %24, %13, %cst_22 {dimension_numbers = #tpu.dot_dimension_numbers<[1], [1], [0], [0], [0, 0, 1, 0], [], []>} : vector<32x128xbf16>, vector<10x128xbf16>, vector<32x10xf32> -> vector<32x10xf32>
    %cst_23 = arith.constant dense<0xFF800000> : vector<32xf32>
    %26 = vector.multi_reduction <maximumf>, %25, %cst_23 [1] : vector<32x10xf32> to vector<32xf32>
    %27 = vector.shape_cast %26 : vector<32xf32> to vector<32x1xf32>
    %28 = vector.broadcast %27 : vector<32x1xf32> to vector<32x10xf32>
    %29 = arith.subf %25, %28 : vector<32x10xf32>
    %30 = math.exp %29 : vector<32x10xf32>
    %cst_24 = arith.constant dense<0.000000e+00> : vector<32xf32>
    %31 = vector.multi_reduction <add>, %30, %cst_24 [1] : vector<32x10xf32> to vector<32xf32>
    %32 = vector.shape_cast %31 : vector<32xf32> to vector<32x1xf32>
    %33 = tpu.reciprocal %32 {approx = true} : vector<32x1xf32> -> vector<32x1xf32>
    %34 = vector.broadcast %33 : vector<32x1xf32> to vector<32x10xf32>
    %35 = arith.mulf %30, %34 : vector<32x10xf32>
    %36 = vector.broadcast %17 : vector<1x128xf32> to vector<32x128xf32>
    %37 = arith.subf %20, %36 : vector<32x128xf32>
    %38 = arith.truncf %20 : vector<32x128xf32> to vector<32x128xbf16>
    %cst_25 = arith.constant dense<0.000000e+00> : vector<32x128xf32>
    %39 = tpu.matmul %38, %11, %cst_25 {dimension_numbers = #tpu.dot_dimension_numbers<[1], [0], [0], [1], [0, 0, 1, 1], [], []>} : vector<32x128xbf16>, vector<128x128xbf16>, vector<32x128xf32> -> vector<32x128xf32>
    %40 = vector.broadcast %16 : vector<1x128xf32> to vector<32x128xf32>
    %41 = arith.addf %39, %40 : vector<32x128xf32>
    %42 = arith.truncf %23 : vector<16x128xf32> to vector<16x128xbf16>
    %cst_26 = arith.constant dense<0.000000e+00> : vector<16x128xf32>
    %43 = tpu.matmul %42, %11, %cst_26 {dimension_numbers = #tpu.dot_dimension_numbers<[1], [0], [0], [1], [0, 0, 1, 1], [], []>} : vector<16x128xbf16>, vector<128x128xbf16>, vector<16x128xf32> -> vector<16x128xf32>
    %44 = vector.broadcast %16 : vector<1x128xf32> to vector<16x128xf32>
    %45 = arith.addf %43, %44 : vector<16x128xf32>
    %46 = vector.shape_cast %41 : vector<32x128xf32> to vector<2x16x128xf32>
    %c0_27 = arith.constant 0 : index
    %c0_28 = arith.constant 0 : index
    %c0_29 = arith.constant 0 : index
    %47 = vector.load %arg11[%c0_27, %c0_28, %c0_29] : memref<2x16x128xf32, #tpu.memory_space<vmem>>, vector<2x16x128xf32>
    tpu.vector_store %arg11[%c0_27, %c0_28, %c0_29], %46 {strides = array<i32>} : memref<2x16x128xf32, #tpu.memory_space<vmem>>, vector<2x16x128xf32>,
    %48 = vector.shape_cast %45 : vector<16x128xf32> to vector<2x8x128xf32>
    %c0_30 = arith.constant 0 : index
    %c0_31 = arith.constant 0 : index
    %c0_32 = arith.constant 0 : index
    %49 = vector.load %arg12[%c0_30, %c0_31, %c0_32] : memref<2x8x128xf32, #tpu.memory_space<vmem>>, vector<2x8x128xf32>
    tpu.vector_store %arg12[%c0_30, %c0_31, %c0_32], %48 {strides = array<i32>} : memref<2x8x128xf32, #tpu.memory_space<vmem>>, vector<2x8x128xf32>,
    %50 = vector.extract_strided_slice %35 {offsets = [0, 0], sizes = [16, 10], strides = [1, 1]} : vector<32x10xf32> to vector<16x10xf32>
    %51 = vector.extract_strided_slice %37 {offsets = [0, 0], sizes = [16, 128], strides = [1, 1]} : vector<32x128xf32> to vector<16x128xf32>
    %cst_33 = arith.constant dense<0.000000e+00> : vector<10x128xf32>
    %52 = tpu.matmul %50, %51, %cst_33 {dimension_numbers = #tpu.dot_dimension_numbers<[0], [0], [1], [1], [0, 1, 1, 1], [], []>} : vector<16x10xf32>, vector<16x128xf32>, vector<10x128xf32> -> vector<10x128xf32>
    %53 = arith.mulf %52, %52 : vector<10x128xf32>
    %cst_34 = arith.constant dense<0.000000e+00> : vector<10xf32>
    %54 = vector.multi_reduction <add>, %53, %cst_34 [1] : vector<10x128xf32> to vector<10xf32>
    %55 = vector.shape_cast %54 : vector<10xf32> to vector<10x1xf32>
    %cst_35 = arith.constant 1.000000e-24 : f32
    %56 = vector.broadcast %cst_35 : f32 to vector<10x1xf32>
    %57 = arith.maximumf %55, %56 : vector<10x1xf32>
    %58 = math.rsqrt %57 : vector<10x1xf32>
    %59 = vector.broadcast %58 : vector<10x1xf32> to vector<10x128xf32>
    %60 = arith.mulf %52, %59 : vector<10x128xf32>
    %61 = arith.truncf %60 : vector<10x128xf32> to vector<10x128xbf16>
    %cst_36 = arith.constant dense<0.000000e+00> : vector<10x128xf32>
    %62 = tpu.matmul %61, %11, %cst_36 {dimension_numbers = #tpu.dot_dimension_numbers<[1], [0], [0], [1], [0, 0, 1, 1], [], []>} : vector<10x128xbf16>, vector<128x128xbf16>, vector<10x128xf32> -> vector<10x128xf32>
    %63 = vector.broadcast %16 : vector<1x128xf32> to vector<10x128xf32>
    %64 = arith.addf %62, %63 : vector<10x128xf32>
    %c0_37 = arith.constant 0 : index
    %c0_38 = arith.constant 0 : index
    %c0_39 = arith.constant 0 : index
    %65 = vector.load %arg13[%c0_37, %c0_38, %c0_39] : memref<2x10x128xf32, #tpu.memory_space<vmem>>, vector<1x10x128xf32>
    %66 = vector.shape_cast %65 : vector<1x10x128xf32> to vector<10x128xf32>
    %67 = vector.shape_cast %64 : vector<10x128xf32> to vector<1x10x128xf32>
    tpu.vector_store %arg13[%c0_37, %c0_38, %c0_39], %67 {strides = array<i32>} : memref<2x10x128xf32, #tpu.memory_space<vmem>>, vector<1x10x128xf32>,
    %68 = vector.extract_strided_slice %35 {offsets = [16, 0], sizes = [16, 10], strides = [1, 1]} : vector<32x10xf32> to vector<16x10xf32>
    %69 = vector.extract_strided_slice %37 {offsets = [16, 0], sizes = [16, 128], strides = [1, 1]} : vector<32x128xf32> to vector<16x128xf32>
    %cst_40 = arith.constant dense<0.000000e+00> : vector<10x128xf32>
    %70 = tpu.matmul %68, %69, %cst_40 {dimension_numbers = #tpu.dot_dimension_numbers<[0], [0], [1], [1], [0, 1, 1, 1], [], []>} : vector<16x10xf32>, vector<16x128xf32>, vector<10x128xf32> -> vector<10x128xf32>
    %71 = arith.mulf %70, %70 : vector<10x128xf32>
    %cst_41 = arith.constant dense<0.000000e+00> : vector<10xf32>
    %72 = vector.multi_reduction <add>, %71, %cst_41 [1] : vector<10x128xf32> to vector<10xf32>
    %73 = vector.shape_cast %72 : vector<10xf32> to vector<10x1xf32>
    %cst_42 = arith.constant 1.000000e-24 : f32
    %74 = vector.broadcast %cst_42 : f32 to vector<10x1xf32>
    %75 = arith.maximumf %73, %74 : vector<10x1xf32>
    %76 = math.rsqrt %75 : vector<10x1xf32>
    %77 = vector.broadcast %76 : vector<10x1xf32> to vector<10x128xf32>
    %78 = arith.mulf %70, %77 : vector<10x128xf32>
    %79 = arith.truncf %78 : vector<10x128xf32> to vector<10x128xbf16>
    %cst_43 = arith.constant dense<0.000000e+00> : vector<10x128xf32>
    %80 = tpu.matmul %79, %11, %cst_43 {dimension_numbers = #tpu.dot_dimension_numbers<[1], [0], [0], [1], [0, 0, 1, 1], [], []>} : vector<10x128xbf16>, vector<128x128xbf16>, vector<10x128xf32> -> vector<10x128xf32>
    %81 = vector.broadcast %16 : vector<1x128xf32> to vector<10x128xf32>
    %82 = arith.addf %80, %81 : vector<10x128xf32>
    %c1 = arith.constant 1 : index
    %c0_44 = arith.constant 0 : index
    %c0_45 = arith.constant 0 : index
    %83 = vector.load %arg13[%c1, %c0_44, %c0_45] : memref<2x10x128xf32, #tpu.memory_space<vmem>>, vector<1x10x128xf32>
    %84 = vector.shape_cast %83 : vector<1x10x128xf32> to vector<10x128xf32>
    %85 = vector.shape_cast %82 : vector<10x128xf32> to vector<1x10x128xf32>
    tpu.vector_store %arg13[%c1, %c0_44, %c0_45], %85 {strides = array<i32>} : memref<2x10x128xf32, #tpu.memory_space<vmem>>, vector<1x10x128xf32>,
    return
  }
  func.func @transform_0(%arg0: i32) -> (i32, i32, i32) {
    %c0_i32 = arith.constant 0 : i32
    %c0_i32_0 = arith.constant 0 : i32
    %c0_i32_1 = arith.constant 0 : i32
    return %arg0, %c0_i32, %c0_i32_0 : i32, i32, i32
  }
  func.func @transform_1(%arg0: i32) -> (i32, i32, i32) {
    %c0_i32 = arith.constant 0 : i32
    %c0_i32_0 = arith.constant 0 : i32
    %c0_i32_1 = arith.constant 0 : i32
    return %arg0, %c0_i32, %c0_i32_0 : i32, i32, i32
  }
  func.func @transform_2(%arg0: i32) -> (i32, i32) {
    %c0_i32 = arith.constant 0 : i32
    %c0_i32_0 = arith.constant 0 : i32
    %c0_i32_1 = arith.constant 0 : i32
    return %c0_i32, %c0_i32_0 : i32, i32
  }
  func.func @transform_3(%arg0: i32) -> (i32, i32) {
    %c0_i32 = arith.constant 0 : i32
    %c0_i32_0 = arith.constant 0 : i32
    %c0_i32_1 = arith.constant 0 : i32
    return %c0_i32, %c0_i32_0 : i32, i32
  }
  func.func @transform_4(%arg0: i32) -> (i32, i32) {
    %c0_i32 = arith.constant 0 : i32
    %c0_i32_0 = arith.constant 0 : i32
    %c0_i32_1 = arith.constant 0 : i32
    return %c0_i32, %c0_i32_0 : i32, i32
  }
  func.func @transform_5(%arg0: i32) -> (i32, i32) {
    %c0_i32 = arith.constant 0 : i32
    %c0_i32_0 = arith.constant 0 : i32
    %c0_i32_1 = arith.constant 0 : i32
    return %c0_i32, %c0_i32_0 : i32, i32
  }
  func.func @transform_6(%arg0: i32) -> (i32, i32) {
    %c0_i32 = arith.constant 0 : i32
    %c0_i32_0 = arith.constant 0 : i32
    %c0_i32_1 = arith.constant 0 : i32
    return %c0_i32, %c0_i32_0 : i32, i32
  }
  func.func @transform_7(%arg0: i32) -> (i32, i32) {
    %c0_i32 = arith.constant 0 : i32
    %c0_i32_0 = arith.constant 0 : i32
    %c0_i32_1 = arith.constant 0 : i32
    return %c0_i32, %c0_i32_0 : i32, i32
  }
  func.func @transform_8(%arg0: i32) -> (i32, i32) {
    %c0_i32 = arith.constant 0 : i32
    %c0_i32_0 = arith.constant 0 : i32
    %c0_i32_1 = arith.constant 0 : i32
    return %c0_i32, %c0_i32_0 : i32, i32
  }
  func.func @transform_9(%arg0: i32) -> (i32, i32) {
    %c0_i32 = arith.constant 0 : i32
    %c0_i32_0 = arith.constant 0 : i32
    %c0_i32_1 = arith.constant 0 : i32
    return %c0_i32, %c0_i32_0 : i32, i32
  }
  func.func @transform_10(%arg0: i32) -> (i32, i32, i32) {
    %c0_i32 = arith.constant 0 : i32
    %c0_i32_0 = arith.constant 0 : i32
    %c0_i32_1 = arith.constant 0 : i32
    return %arg0, %c0_i32, %c0_i32_0 : i32, i32, i32
  }
  func.func @transform_11(%arg0: i32) -> (i32, i32, i32) {
    %c0_i32 = arith.constant 0 : i32
    %c0_i32_0 = arith.constant 0 : i32
    %c0_i32_1 = arith.constant 0 : i32
    return %arg0, %c0_i32, %c0_i32_0 : i32, i32, i32
  }
  func.func @transform_12(%arg0: i32) -> (i32, i32, i32) {
    %c0_i32 = arith.constant 0 : i32
    %c0_i32_0 = arith.constant 0 : i32
    %c0_i32_1 = arith.constant 0 : i32
    return %arg0, %c0_i32, %c0_i32_0 : i32, i32, i32
  }
}

</mosaic_0001>

<llo_original>
// kernel: tpu_custom_call.1
$region0: #{tpu_custom_call.1}
  #allocation0 [shape = 'u32[]', space=smem, size = 0x4, offset = 0x4, fixed_abs, tag = 'smem constant byte address 0x4 - core index']
  #allocation1 [shape = 'u32[144,128]{1,0:T(1,128)}', space=vmem, size = 0x12000, scoped, tag = 'internal scratch']
  %s0 = inlined_call_operand.hbm [shape: f32[8,16,128], index: 0, kind: input, shape index: {}]
  %s1 = inlined_call_operand.hbm [shape: f32[8,8,256], index: 1, kind: input, shape index: {}]
  %s2 = inlined_call_operand.hbm [shape: f32[128,128], index: 2, kind: input, shape index: {}]
  %s3 = inlined_call_operand.vmem [shape: f32[1,128], index: 3, kind: input, shape index: {}]
  %s4 = inlined_call_operand.hbm [shape: f32[256,128], index: 4, kind: input, shape index: {}]
  %s5 = inlined_call_operand.vmem [shape: f32[1,128], index: 5, kind: input, shape index: {}]
  %s6 = inlined_call_operand.hbm [shape: f32[10,128], index: 6, kind: input, shape index: {}]
  %s7 = inlined_call_operand.vmem [shape: f32[1,128], index: 7, kind: input, shape index: {}]
  %s8 = inlined_call_operand.hbm [shape: f32[128,128], index: 8, kind: input, shape index: {}]
  %s9 = inlined_call_operand.vmem [shape: f32[1,128], index: 9, kind: input, shape index: {}]
  %s10 = inlined_call_operand.hbm [shape: f32[8,16,128], index: 10, kind: output, shape index: {0}]
  %s11 = inlined_call_operand.hbm [shape: f32[8,8,128], index: 11, kind: output, shape index: {1}]
  %s12 = inlined_call_operand.vmem [shape: f32[8,10,128], index: 12, kind: output, shape index: {2}]
  %13 = xla_tuple %s10, %s11, %s12
  %s14 = sld [smem:[#allocation0]]
  $region113: #{tpu_custom_call.1} parent=0
    _
  %s16 = ssub.s32 1, %s14
  %s17 = scalar_select 0, %s16, %s14
  $region1: #{tpu_custom_call.1} parent=0
    #allocation2 [shape = 'u8[32768]{0}', space=vmem, size = 0x8000, scoped, tag = 'input window, operand 0']
    #allocation3 [shape = 's32[2]{0}', space=sflag, size = 0x8, scoped, tag = 'scoped memory for tpu_custom_call.1']
    #allocation4 [shape = 's32[2]{0}', space=sflag, size = 0x8, scoped, tag = 'scoped memory for tpu_custom_call.1']
    #allocation5 [shape = 'u8[32768]{0}', space=vmem, size = 0x8000, scoped, tag = 'input window, operand 1']
    #allocation6 [shape = 's32[2]{0}', space=sflag, size = 0x8, scoped, tag = 'scoped memory for tpu_custom_call.1']
    #allocation7 [shape = 'u8[65536]{0}', space=vmem, size = 0x10000, scoped, tag = 'input window, operand 2, single buffered']
    #allocation8 [shape = 'u8[131072]{0}', space=vmem, size = 0x20000, scoped, tag = 'input window, operand 4, single buffered']
    #allocation9 [shape = 's32[1]{0}', space=sflag, size = 0x4, scoped, tag = 'scoped memory for tpu_custom_call.1']
    #allocation10 [shape = 'u8[8192]{0}', space=vmem, size = 0x2000, scoped, tag = 'input window, operand 6, single buffered']
    #allocation11 [shape = 'u8[65536]{0}', space=vmem, size = 0x10000, scoped, tag = 'input window, operand 8, single buffered']
    #allocation12 [shape = 's32[1]{0}', space=sflag, size = 0x4, scoped, tag = 'scoped memory for tpu_custom_call.1']
    #allocation13 [shape = 'u8[32768]{0}', space=vmem, size = 0x8000, scoped, tag = 'output window, operand 0']
    #allocation14 [shape = 'u8[16384]{0}', space=vmem, size = 0x4000, scoped, tag = 'output window, operand 1']
    #allocation15 [shape = 's32[2]{0}', space=sflag, size = 0x8, scoped, tag = 'scoped memory for tpu_custom_call.1']
    %18 = vsyncpa [#allocation3], 0
    %s19 = scalar_lea.sflag [#allocation3], 1
    %20 = vsyncpa %s19, 0
    %21 = vsyncpa [#allocation6], 0
    %s22 = scalar_lea.sflag [#allocation6], 1
    %23 = vsyncpa %s22, 0
    %24 = vsyncpa [#allocation9], 0
    %25 = vsyncpa [#allocation12], 0
    %26 = vsyncpa [#allocation4], 0
    %s27 = scalar_lea.sflag [#allocation4], 1
    %28 = vsyncpa %s27, 0
    %29 = vsyncpa [#allocation15], 0
    %s30 = scalar_lea.sflag [#allocation15], 1
    %31 = vsyncpa %s30, 0
    loop: start=0, step=1, limit=6
    $region2: #{tpu_custom_call.1} parent=1 // loop_pre_header
      _
    $region3: #{tpu_custom_call.1} parent=1 // loop_header
      %s33 = sphi 0, %s37
      %p34 = scmp.ge.s32.totalorder %s33, 6
      %s43 = sphi 0, %s45
      %s46 = sphi 0, %s43
      %s47 = sphi 0, %s46
      %s63 = sphi 0, %s47
      %s69 = sphi 0, %s71
      %s72 = sphi 0, %s69
      %s73 = sphi 0, %s72
      %s89 = sphi 0, %s73
      %s93 = sphi 0, %s93
      %s95 = sphi 0, %s93
      %s96 = sphi 0, %s95
      %s110 = sphi 0, %s96
      %s114 = sphi 0, %s114
      %s116 = sphi 0, %s114
      %s117 = sphi 0, %s116
      %s131 = sphi 0, %s117
      %s135 = sphi 0, %s135
      %s137 = sphi 0, %s135
      %s138 = sphi 0, %s137
      %s152 = sphi 0, %s138
      %s156 = sphi 0, %s156
      %s158 = sphi 0, %s156
      %s159 = sphi 0, %s158
      %s173 = sphi 0, %s159
      %s177 = sphi 0, %s177
      %s179 = sphi 0, %s177
      %s180 = sphi 0, %s179
      %s194 = sphi 0, %s180
      %s198 = sphi 0, %s198
      %s200 = sphi 0, %s198
      %s201 = sphi 0, %s200
      %s215 = sphi 0, %s201
      %s219 = sphi 0, %s219
      %s221 = sphi 0, %s219
      %s222 = sphi 0, %s221
      %s236 = sphi 0, %s222
      %s240 = sphi 0, %s240
      %s242 = sphi 0, %s240
      %s243 = sphi 0, %s242
      %s257 = sphi 0, %s243
      %s263 = sphi 0, %s265
      %s266 = sphi 0, %s263
      %s267 = sphi 0, %s266
      %s283 = sphi 0, %s267
      %s289 = sphi 0, %s291
      %s292 = sphi 0, %s289
      %s293 = sphi 0, %s292
      %s309 = sphi 0, %s293
      %s315 = sphi 0, %s317
      %s318 = sphi 0, %s315
      %s319 = sphi 0, %s318
      %s335 = sphi 0, %s319
    $region4: #{tpu_custom_call.1} parent=1 // loop_header_branch
      %36 = sbr.rel (%p34) target = $region8
    $region5: #{tpu_custom_call.1} parent=1 // loop_body
      %s38 = ssub.s32 %s33, 1
      %s39 = ssub.s32 %s33, 2
      %s40 = sadd.s32 %s33, 1
      %s41 = ssub.s32 %s33, %s40
      %p42 = scmp.eq.s32.totalorder %s41, 0
      %s44 = sadd.s32 %s43, 1
      %s45 = scalar_select %p42, %s43, %s44
      %p48 = pneg %p42
      %p49 = scmp.eq.s32.totalorder %s33, 3
      %p50 = por %p48, %p49
      %p51 = scmp.ne.s32.totalorder %s43, %s46
      %p52 = scmp.eq.s32.totalorder %s33, 0
      %p53 = por %p51, %p52
      %p54 = scmp.ne.s32.totalorder %s43, %s46
      %p55 = scmp.eq.s32.totalorder %s38, 3
      %p56 = por %p54, %p55
      %p57 = scmp.ne.s32.totalorder %s46, %s47
      %p58 = scmp.eq.s32.totalorder %s38, 0
      %p59 = por %p57, %p58
      %p60 = scmp.ne.s32.totalorder %s46, %s47
      %p61 = scmp.eq.s32.totalorder %s39, 3
      %p62 = por %p60, %p61
      %p64 = scmp.ne.s32.totalorder %s47, %s63
      %p65 = scmp.eq.s32.totalorder %s39, 0
      %p66 = por %p64, %p65
      %s67 = ssub.s32 %s33, %s40
      %p68 = scmp.eq.s32.totalorder %s67, 0
      %s70 = sadd.s32 %s69, 1
      %s71 = scalar_select %p68, %s69, %s70
      %p74 = pneg %p68
      %p75 = scmp.eq.s32.totalorder %s33, 3
      %p76 = por %p74, %p75
      %p77 = scmp.ne.s32.totalorder %s69, %s72
      %p78 = scmp.eq.s32.totalorder %s33, 0
      %p79 = por %p77, %p78
      %p80 = scmp.ne.s32.totalorder %s69, %s72
      %p81 = scmp.eq.s32.totalorder %s38, 3
      %p82 = por %p80, %p81
      %p83 = scmp.ne.s32.totalorder %s72, %s73
      %p84 = scmp.eq.s32.totalorder %s38, 0
      %p85 = por %p83, %p84
      %p86 = scmp.ne.s32.totalorder %s72, %s73
      %p87 = scmp.eq.s32.totalorder %s39, 3
      %p88 = por %p86, %p87
      %p90 = scmp.ne.s32.totalorder %s73, %s89
      %p91 = scmp.eq.s32.totalorder %s39, 0
      %p92 = por %p90, %p91
      %s94 = sadd.s32 %s93, 1
      %p97 = scmp.eq.s32.totalorder %s33, 3
      %p98 = scmp.ne.s32.totalorder %s93, %s95
      %p99 = scmp.eq.s32.totalorder %s33, 0
      %p100 = por %p98, %p99
      %p101 = scmp.ne.s32.totalorder %s93, %s95
      %p102 = scmp.eq.s32.totalorder %s38, 3
      %p103 = por %p101, %p102
      %p104 = scmp.ne.s32.totalorder %s95, %s96
      %p105 = scmp.eq.s32.totalorder %s38, 0
      %p106 = por %p104, %p105
      %p107 = scmp.ne.s32.totalorder %s95, %s96
      %p108 = scmp.eq.s32.totalorder %s39, 3
      %p109 = por %p107, %p108
      %p111 = scmp.ne.s32.totalorder %s96, %s110
      %p112 = scmp.eq.s32.totalorder %s39, 0
      %p113 = por %p111, %p112
      %s115 = sadd.s32 %s114, 1
      %p118 = scmp.eq.s32.totalorder %s33, 3
      %p119 = scmp.ne.s32.totalorder %s114, %s116
      %p120 = scmp.eq.s32.totalorder %s33, 0
      %p121 = por %p119, %p120
      %p122 = scmp.ne.s32.totalorder %s114, %s116
      %p123 = scmp.eq.s32.totalorder %s38, 3
      %p124 = por %p122, %p123
      %p125 = scmp.ne.s32.totalorder %s116, %s117
      %p126 = scmp.eq.s32.totalorder %s38, 0
      %p127 = por %p125, %p126
      %p128 = scmp.ne.s32.totalorder %s116, %s117
      %p129 = scmp.eq.s32.totalorder %s39, 3
      %p130 = por %p128, %p129
      %p132 = scmp.ne.s32.totalorder %s117, %s131
      %p133 = scmp.eq.s32.totalorder %s39, 0
      %p134 = por %p132, %p133
      %s136 = sadd.s32 %s135, 1
      %p139 = scmp.eq.s32.totalorder %s33, 3
      %p140 = scmp.ne.s32.totalorder %s135, %s137
      %p141 = scmp.eq.s32.totalorder %s33, 0
      %p142 = por %p140, %p141
      %p143 = scmp.ne.s32.totalorder %s135, %s137
      %p144 = scmp.eq.s32.totalorder %s38, 3
      %p145 = por %p143, %p144
      %p146 = scmp.ne.s32.totalorder %s137, %s138
      %p147 = scmp.eq.s32.totalorder %s38, 0
      %p148 = por %p146, %p147
      %p149 = scmp.ne.s32.totalorder %s137, %s138
      %p150 = scmp.eq.s32.totalorder %s39, 3
      %p151 = por %p149, %p150
      %p153 = scmp.ne.s32.totalorder %s138, %s152
      %p154 = scmp.eq.s32.totalorder %s39, 0
      %p155 = por %p153, %p154
      %s157 = sadd.s32 %s156, 1
      %p160 = scmp.eq.s32.totalorder %s33, 3
      %p161 = scmp.ne.s32.totalorder %s156, %s158
      %p162 = scmp.eq.s32.totalorder %s33, 0
      %p163 = por %p161, %p162
      %p164 = scmp.ne.s32.totalorder %s156, %s158
      %p165 = scmp.eq.s32.totalorder %s38, 3
      %p166 = por %p164, %p165
      %p167 = scmp.ne.s32.totalorder %s158, %s159
      %p168 = scmp.eq.s32.totalorder %s38, 0
      %p169 = por %p167, %p168
      %p170 = scmp.ne.s32.totalorder %s158, %s159
      %p171 = scmp.eq.s32.totalorder %s39, 3
      %p172 = por %p170, %p171
      %p174 = scmp.ne.s32.totalorder %s159, %s173
      %p175 = scmp.eq.s32.totalorder %s39, 0
      %p176 = por %p174, %p175
      %s178 = sadd.s32 %s177, 1
      %p181 = scmp.eq.s32.totalorder %s33, 3
      %p182 = scmp.ne.s32.totalorder %s177, %s179
      %p183 = scmp.eq.s32.totalorder %s33, 0
      %p184 = por %p182, %p183
      %p185 = scmp.ne.s32.totalorder %s177, %s179
      %p186 = scmp.eq.s32.totalorder %s38, 3
      %p187 = por %p185, %p186
      %p188 = scmp.ne.s32.totalorder %s179, %s180
      %p189 = scmp.eq.s32.totalorder %s38, 0
      %p190 = por %p188, %p189
      %p191 = scmp.ne.s32.totalorder %s179, %s180
      %p192 = scmp.eq.s32.totalorder %s39, 3
      %p193 = por %p191, %p192
      %p195 = scmp.ne.s32.totalorder %s180, %s194
      %p196 = scmp.eq.s32.totalorder %s39, 0
      %p197 = por %p195, %p196
      %s199 = sadd.s32 %s198, 1
      %p202 = scmp.eq.s32.totalorder %s33, 3
      %p203 = scmp.ne.s32.totalorder %s198, %s200
      %p204 = scmp.eq.s32.totalorder %s33, 0
      %p205 = por %p203, %p204
      %p206 = scmp.ne.s32.totalorder %s198, %s200
      %p207 = scmp.eq.s32.totalorder %s38, 3
      %p208 = por %p206, %p207
      %p209 = scmp.ne.s32.totalorder %s200, %s201
      %p210 = scmp.eq.s32.totalorder %s38, 0
      %p211 = por %p209, %p210
      %p212 = scmp.ne.s32.totalorder %s200, %s201
      %p213 = scmp.eq.s32.totalorder %s39, 3
      %p214 = por %p212, %p213
      %p216 = scmp.ne.s32.totalorder %s201, %s215
      %p217 = scmp.eq.s32.totalorder %s39, 0
      %p218 = por %p216, %p217
      %s220 = sadd.s32 %s219, 1
      %p223 = scmp.eq.s32.totalorder %s33, 3
      %p224 = scmp.ne.s32.totalorder %s219, %s221
      %p225 = scmp.eq.s32.totalorder %s33, 0
      %p226 = por %p224, %p225
      %p227 = scmp.ne.s32.totalorder %s219, %s221
      %p228 = scmp.eq.s32.totalorder %s38, 3
      %p229 = por %p227, %p228
      %p230 = scmp.ne.s32.totalorder %s221, %s222
      %p231 = scmp.eq.s32.totalorder %s38, 0
      %p232 = por %p230, %p231
      %p233 = scmp.ne.s32.totalorder %s221, %s222
      %p234 = scmp.eq.s32.totalorder %s39, 3
      %p235 = por %p233, %p234
      %p237 = scmp.ne.s32.totalorder %s222, %s236
      %p238 = scmp.eq.s32.totalorder %s39, 0
      %p239 = por %p237, %p238
      %s241 = sadd.s32 %s240, 1
      %p244 = scmp.eq.s32.totalorder %s33, 3
      %p245 = scmp.ne.s32.totalorder %s240, %s242
      %p246 = scmp.eq.s32.totalorder %s33, 0
      %p247 = por %p245, %p246
      %p248 = scmp.ne.s32.totalorder %s240, %s242
      %p249 = scmp.eq.s32.totalorder %s38, 3
      %p250 = por %p248, %p249
      %p251 = scmp.ne.s32.totalorder %s242, %s243
      %p252 = scmp.eq.s32.totalorder %s38, 0
      %p253 = por %p251, %p252
      %p254 = scmp.ne.s32.totalorder %s242, %s243
      %p255 = scmp.eq.s32.totalorder %s39, 3
      %p256 = por %p254, %p255
      %p258 = scmp.ne.s32.totalorder %s243, %s257
      %p259 = scmp.eq.s32.totalorder %s39, 0
      %p260 = por %p258, %p259
      %s261 = ssub.s32 %s33, %s40
      %p262 = scmp.eq.s32.totalorder %s261, 0
      %s264 = sadd.s32 %s263, 1
      %s265 = scalar_select %p262, %s263, %s264
      %p268 = pneg %p262
      %p269 = scmp.eq.s32.totalorder %s33, 3
      %p270 = por %p268, %p269
      %p271 = scmp.ne.s32.totalorder %s263, %s266
      %p272 = scmp.eq.s32.totalorder %s33, 0
      %p273 = por %p271, %p272
      %p274 = scmp.ne.s32.totalorder %s263, %s266
      %p275 = scmp.eq.s32.totalorder %s38, 3
      %p276 = por %p274, %p275
      %p277 = scmp.ne.s32.totalorder %s266, %s267
      %p278 = scmp.eq.s32.totalorder %s38, 0
      %p279 = por %p277, %p278
      %p280 = scmp.ne.s32.totalorder %s266, %s267
      %p281 = scmp.eq.s32.totalorder %s39, 3
      %p282 = por %p280, %p281
      %p284 = scmp.ne.s32.totalorder %s267, %s283
      %p285 = scmp.eq.s32.totalorder %s39, 0
      %p286 = por %p284, %p285
      %s287 = ssub.s32 %s33, %s40
      %p288 = scmp.eq.s32.totalorder %s287, 0
      %s290 = sadd.s32 %s289, 1
      %s291 = scalar_select %p288, %s289, %s290
      %p294 = pneg %p288
      %p295 = scmp.eq.s32.totalorder %s33, 3
      %p296 = por %p294, %p295
      %p297 = scmp.ne.s32.totalorder %s289, %s292
      %p298 = scmp.eq.s32.totalorder %s33, 0
      %p299 = por %p297, %p298
      %p300 = scmp.ne.s32.totalorder %s289, %s292
      %p301 = scmp.eq.s32.totalorder %s38, 3
      %p302 = por %p300, %p301
      %p303 = scmp.ne.s32.totalorder %s292, %s293
      %p304 = scmp.eq.s32.totalorder %s38, 0
      %p305 = por %p303, %p304
      %p306 = scmp.ne.s32.totalorder %s292, %s293
      %p307 = scmp.eq.s32.totalorder %s39, 3
      %p308 = por %p306, %p307
      %p310 = scmp.ne.s32.totalorder %s293, %s309
      %p311 = scmp.eq.s32.totalorder %s39, 0
      %p312 = por %p310, %p311
      %s313 = ssub.s32 %s33, %s40
      %p314 = scmp.eq.s32.totalorder %s313, 0
      %s316 = sadd.s32 %s315, 1
      %s317 = scalar_select %p314, %s315, %s316
      %p320 = pneg %p314
      %p321 = scmp.eq.s32.totalorder %s33, 3
      %p322 = por %p320, %p321
      %p323 = scmp.ne.s32.totalorder %s315, %s318
      %p324 = scmp.eq.s32.totalorder %s33, 0
      %p325 = por %p323, %p324
      %p326 = scmp.ne.s32.totalorder %s315, %s318
      %p327 = scmp.eq.s32.totalorder %s38, 3
      %p328 = por %p326, %p327
      %p329 = scmp.ne.s32.totalorder %s318, %s319
      %p330 = scmp.eq.s32.totalorder %s38, 0
      %p331 = por %p329, %p330
      %p332 = scmp.ne.s32.totalorder %s318, %s319
      %p333 = scmp.eq.s32.totalorder %s39, 3
      %p334 = por %p332, %p333
      %p336 = scmp.ne.s32.totalorder %s319, %s335
      %p337 = scmp.eq.s32.totalorder %s39, 0
      %p338 = por %p336, %p337
      %p339 = scmp.le.s32.totalorder 1, %s33
      %p340 = scmp.lt.s32.totalorder %s33, 5
      %p341 = pnand %p339, %p340
      %p342 = pneg %p341
      // Predicated region
      $region9: #{tpu_custom_call.1} parent=5 // pred_check
        _
      $region10: #{tpu_custom_call.1} parent=5 // pred_check_branch
        %344 = sbr.rel (%p341) target = $region12
      $region11: #{tpu_custom_call.1} parent=5 // pred_region
        %s345 = ssub.s32 %s33, 1
        // Predicated region
        $region13: #{tpu_custom_call.1} parent=11 // pred_check
          %p346 = pneg %p106
        $region14: #{tpu_custom_call.1} parent=11 // pred_check_branch
          %348 = sbr.rel (%p346) target = $region16
        $region15: #{tpu_custom_call.1} parent=11 // pred_region
          %s350 = ssub.s32 2048, 2048
          %351 = vsyncadd [#allocation6], %s350
          %s352 = sshll.u32 [#allocation7], 4
          %s353 = int_to_ptr.vmem [resolvable:$true] %s352
          %358 = dma.hbm_to_vmem [thread:$0]  %s2, 2048, %s353, [#allocation6], 128, 128, 8
        $region16: #{tpu_custom_call.1} parent=11 // pred_fallthru
          _
        // Predicated region
        $region17: #{tpu_custom_call.1} parent=11 // pred_check
          %p359 = pneg %p127
        $region18: #{tpu_custom_call.1} parent=11 // pred_check_branch
          %361 = sbr.rel (%p359) target = $region20
        $region19: #{tpu_custom_call.1} parent=11 // pred_region
          _
        $region20: #{tpu_custom_call.1} parent=11 // pred_fallthru
          _
        // Predicated region
        $region21: #{tpu_custom_call.1} parent=11 // pred_check
          %p362 = pneg %p148
        $region22: #{tpu_custom_call.1} parent=11 // pred_check_branch
          %364 = sbr.rel (%p362) target = $region24
        $region23: #{tpu_custom_call.1} parent=11 // pred_region
          %s366 = ssub.s32 4096, 4096
          %367 = vsyncadd [#allocation9], %s366
          %s368 = sshll.u32 [#allocation8], 4
          %s369 = int_to_ptr.vmem [resolvable:$true] %s368
          %374 = dma.hbm_to_vmem [thread:$0]  %s4, 4096, %s369, [#allocation9], 128, 128, 8
        $region24: #{tpu_custom_call.1} parent=11 // pred_fallthru
          _
        // Predicated region
        $region25: #{tpu_custom_call.1} parent=11 // pred_check
          %p375 = pneg %p169
        $region26: #{tpu_custom_call.1} parent=11 // pred_check_branch
          %377 = sbr.rel (%p375) target = $region28
        $region27: #{tpu_custom_call.1} parent=11 // pred_region
          _
        $region28: #{tpu_custom_call.1} parent=11 // pred_fallthru
          _
        // Predicated region
        $region29: #{tpu_custom_call.1} parent=11 // pred_check
          %p378 = pneg %p190
        $region30: #{tpu_custom_call.1} parent=11 // pred_check_branch
          %380 = sbr.rel (%p378) target = $region32
        $region31: #{tpu_custom_call.1} parent=11 // pred_region
          %s382 = ssub.s32 256, 256
          %383 = vsyncadd [#allocation9], %s382
          %s384 = sshll.u32 [#allocation10], 4
          %s385 = int_to_ptr.vmem [resolvable:$true] %s384
          %390 = dma.hbm_to_vmem [thread:$0]  %s6, 256, %s385, [#allocation9], 128, 128, 8
        $region32: #{tpu_custom_call.1} parent=11 // pred_fallthru
          _
        // Predicated region
        $region33: #{tpu_custom_call.1} parent=11 // pred_check
          %p391 = pneg %p211
        $region34: #{tpu_custom_call.1} parent=11 // pred_check_branch
          %393 = sbr.rel (%p391) target = $region36
        $region35: #{tpu_custom_call.1} parent=11 // pred_region
          _
        $region36: #{tpu_custom_call.1} parent=11 // pred_fallthru
          _
        // Predicated region
        $region37: #{tpu_custom_call.1} parent=11 // pred_check
          %p394 = pneg %p232
        $region38: #{tpu_custom_call.1} parent=11 // pred_check_branch
          %396 = sbr.rel (%p394) target = $region40
        $region39: #{tpu_custom_call.1} parent=11 // pred_region
          %s398 = ssub.s32 2048, 2048
          %399 = vsyncadd [#allocation12], %s398
          %s400 = sshll.u32 [#allocation11], 4
          %s401 = int_to_ptr.vmem [resolvable:$true] %s400
          %406 = dma.hbm_to_vmem [thread:$0]  %s8, 2048, %s401, [#allocation12], 128, 128, 8
        $region40: #{tpu_custom_call.1} parent=11 // pred_fallthru
          _
        // Predicated region
        $region41: #{tpu_custom_call.1} parent=11 // pred_check
          %p407 = pneg %p253
        $region42: #{tpu_custom_call.1} parent=11 // pred_check_branch
          %409 = sbr.rel (%p407) target = $region44
        $region43: #{tpu_custom_call.1} parent=11 // pred_region
          _
        $region44: #{tpu_custom_call.1} parent=11 // pred_fallthru
          _
      $region12: #{tpu_custom_call.1} parent=5 // pred_fallthru
        _
      %p410 = scmp.lt.s32.totalorder %s33, 4
      // Predicated region
      $region45: #{tpu_custom_call.1} parent=5 // pred_check
        %p411 = pneg %p410
      $region46: #{tpu_custom_call.1} parent=5 // pred_check_branch
        %413 = sbr.rel (%p411) target = $region48
      $region47: #{tpu_custom_call.1} parent=5 // pred_region
        // Predicated region
        $region49: #{tpu_custom_call.1} parent=47 // pred_check
          %p414 = pneg %p53
        $region50: #{tpu_custom_call.1} parent=47 // pred_check_branch
          %416 = sbr.rel (%p414) target = $region52
        $region51: #{tpu_custom_call.1} parent=47 // pred_region
          %s417 = sand.u32 %s43, 1
          %s418 = scalar_lea.sflag [#allocation3], %s417
          %s419 = sand.u32 %s43, 1
          %s420 = smul.addr %s419, 32
          %s421 = scalar_lea.vmem [#allocation2], %s420
          %s422 = smul.u32 2, %s33
          %s424 = ssub.s32 512, 512
          %425 = vsyncadd %s418, %s424
          %s426 = smul.addr %s422, 2
          %s427 = smul.addr %s426, 128
          %s428 = scalar_lea.hbm %s0, %s427
          %s429 = sshll.u32 %s421, 4
          %s430 = int_to_ptr.vmem [resolvable:$true] %s429
          %435 = dma.hbm_to_vmem [thread:$0]  %s428, 512, %s430, %s418, 128, 128, 8
        $region52: #{tpu_custom_call.1} parent=47 // pred_fallthru
          _
        // Predicated region
        $region53: #{tpu_custom_call.1} parent=47 // pred_check
          %p436 = pneg %p79
        $region54: #{tpu_custom_call.1} parent=47 // pred_check_branch
          %438 = sbr.rel (%p436) target = $region56
        $region55: #{tpu_custom_call.1} parent=47 // pred_region
          %s439 = sand.u32 %s33, 1
          %s440 = scalar_lea.sflag [#allocation6], %s439
          %s441 = sand.u32 %s69, 1
          %s442 = smul.addr %s441, 32
          %s443 = scalar_lea.vmem [#allocation5], %s442
          %s444 = smul.u32 2, %s33
          %s446 = ssub.s32 512, 512
          %447 = vsyncadd %s440, %s446
          %s448 = smul.addr %s444, 2
          %s449 = smul.addr %s448, 128
          %s450 = scalar_lea.hbm %s1, %s449
          %s451 = sshll.u32 %s443, 4
          %s452 = int_to_ptr.vmem [resolvable:$true] %s451
          %457 = dma.hbm_to_vmem [thread:$0]  %s450, 512, %s452, %s440, 256, 256, 16
        $region56: #{tpu_custom_call.1} parent=47 // pred_fallthru
          _
      $region48: #{tpu_custom_call.1} parent=5 // pred_fallthru
        _
      %p458 = scmp.le.s32.totalorder 1, %s33
      %p459 = scmp.lt.s32.totalorder %s33, 5
      %p460 = pnand %p458, %p459
      %p461 = pneg %p460
      // Predicated region
      $region57: #{tpu_custom_call.1} parent=5 // pred_check
        _
      $region58: #{tpu_custom_call.1} parent=5 // pred_check_branch
        %463 = sbr.rel (%p460) target = $region60
      $region59: #{tpu_custom_call.1} parent=5 // pred_region
        %s464 = ssub.s32 %s33, 1
        %s465 = sand.u32 %s46, 1
        %s466 = scalar_lea.sflag [#allocation3], %s465
        %s467 = sand.u32 %s46, 1
        %s468 = smul.addr %s467, 32
        %s469 = scalar_lea.vmem [#allocation2], %s468
        // Predicated region
        $region61: #{tpu_custom_call.1} parent=59 // pred_check
          %p470 = pneg %p59
        $region62: #{tpu_custom_call.1} parent=59 // pred_check_branch
          %472 = sbr.rel (%p470) target = $region64
        $region63: #{tpu_custom_call.1} parent=59 // pred_region
          %473 = dma.done %s466, 512
        $region64: #{tpu_custom_call.1} parent=59 // pred_fallthru
          _
        %s474 = sand.u32 %s38, 1
        %s475 = scalar_lea.sflag [#allocation6], %s474
        %s476 = sand.u32 %s72, 1
        %s477 = smul.addr %s476, 32
        %s478 = scalar_lea.vmem [#allocation5], %s477
        // Predicated region
        $region65: #{tpu_custom_call.1} parent=59 // pred_check
          %p479 = pneg %p85
        $region66: #{tpu_custom_call.1} parent=59 // pred_check_branch
          %481 = sbr.rel (%p479) target = $region68
        $region67: #{tpu_custom_call.1} parent=59 // pred_region
          %482 = dma.done %s475, 512
        $region68: #{tpu_custom_call.1} parent=59 // pred_fallthru
          _
        // Predicated region
        $region69: #{tpu_custom_call.1} parent=59 // pred_check
          %p483 = pneg %p106
        $region70: #{tpu_custom_call.1} parent=59 // pred_check_branch
          %485 = sbr.rel (%p483) target = $region72
        $region71: #{tpu_custom_call.1} parent=59 // pred_region
          %486 = dma.done [#allocation6], 2048
        $region72: #{tpu_custom_call.1} parent=59 // pred_fallthru
          _
        // Predicated region
        $region73: #{tpu_custom_call.1} parent=59 // pred_check
          %p487 = pneg %p148
        $region74: #{tpu_custom_call.1} parent=59 // pred_check_branch
          %489 = sbr.rel (%p487) target = $region76
        $region75: #{tpu_custom_call.1} parent=59 // pred_region
          %490 = dma.done [#allocation9], 4096
        $region76: #{tpu_custom_call.1} parent=59 // pred_fallthru
          _
        // Predicated region
        $region77: #{tpu_custom_call.1} parent=59 // pred_check
          %p491 = pneg %p190
        $region78: #{tpu_custom_call.1} parent=59 // pred_check_branch
          %493 = sbr.rel (%p491) target = $region80
        $region79: #{tpu_custom_call.1} parent=59 // pred_region
          %494 = dma.done [#allocation9], 256
        $region80: #{tpu_custom_call.1} parent=59 // pred_fallthru
          _
        // Predicated region
        $region81: #{tpu_custom_call.1} parent=59 // pred_check
          %p495 = pneg %p232
        $region82: #{tpu_custom_call.1} parent=59 // pred_check_branch
          %497 = sbr.rel (%p495) target = $region84
        $region83: #{tpu_custom_call.1} parent=59 // pred_region
          %498 = dma.done [#allocation12], 2048
        $region84: #{tpu_custom_call.1} parent=59 // pred_fallthru
          _
        %s499 = sand.u32 %s46, 1
        %s500 = scalar_lea.sflag [#allocation3], %s499
        %s501 = sand.u32 %s46, 1
        %s502 = smul.addr %s501, 32
        %s503 = scalar_lea.vmem [#allocation2], %s502
        %p504 = pneg %p59
        %p505 = pneg %p56
        %s506 = sand.u32 %s38, 1
        %s507 = scalar_lea.sflag [#allocation6], %s506
        %s508 = sand.u32 %s72, 1
        %s509 = smul.addr %s508, 32
        %s510 = scalar_lea.vmem [#allocation5], %s509
        %p511 = pneg %p85
        %p512 = pneg %p82
        %p513 = pneg %p106
        %p514 = pneg %p103
        %p515 = pneg %p127
        %p516 = pneg %p124
        %p517 = pneg %p148
        %p518 = pneg %p145
        %p519 = pneg %p169
        %p520 = pneg %p166
        %p521 = pneg %p190
        %p522 = pneg %p187
        %p523 = pneg %p211
        %p524 = pneg %p208
        %p525 = pneg %p232
        %p526 = pneg %p229
        %p527 = pneg %p253
        %p528 = pneg %p250
        %p529 = pneg %p279
        %p530 = pneg %p276
        %s531 = sand.u32 %s266, 1
        %s532 = scalar_lea.sflag [#allocation4], %s531
        %s533 = sand.u32 %s266, 1
        %s534 = smul.addr %s533, 32
        %s535 = scalar_lea.vmem [#allocation13], %s534
        %p536 = pneg %p305
        %p537 = pneg %p302
        %s538 = sand.u32 %s292, 1
        %s539 = scalar_lea.sflag [#allocation15], %s538
        %s540 = sand.u32 %s292, 1
        %s541 = smul.addr %s540, 16
        %s542 = scalar_lea.vmem [#allocation14], %s541
        %p543 = pneg %p331
        %p544 = pneg %p328
        %s545 = smul.u32 2, %s38
        %p546 = scmp.lt.s32.totalorder %s545, 7
        %s547 = scalar_select %p546, %s545, 7
        %s548 = smul.addr %s547, 2
        %s549 = smul.addr %s548, 8
        %s550 = scalar_lea.vmem %s12, %s549
        %s551 = smul.u32 2, %s38
        %s552 = smul.u32 2, %s38
        %s553 = smul.u32 2, %s38
        %s554 = smul.u32 2, %s38
        %s555 = smul.u32 2, %s38
        %p556 = scmp.lt.s32.totalorder %s555, 7
        %s557 = scalar_select %p556, %s555, 7
        %s558 = smul.addr %s557, 2
        %s559 = smul.addr %s558, 8
        %s560 = scalar_lea.vmem %s12, %s559
        %s561 = smul.u32 2, %s38
        %v563 = vld [vmem:[%s469] sm:$0xff]
        %v564 = vld [vmem:[%s469 + $0x8] sm:$0xff]
        %v565 = vld [vmem:[%s469 + $0x10] sm:$0xff]
        %v566 = vld [vmem:[%s469 + $0x18] sm:$0xff]
        %v567 = vpack.c.bf16 %v564, %v563
        %v568 = vpack.c.bf16 %v566, %v565
        %v569 = vld [vmem:[%s478] sm:$0xff]
        %v570 = vld [vmem:[%s478 + $0x8] sm:$0xff]
        %v571 = vld [vmem:[%s478 + $0x10] sm:$0xff]
        %v572 = vld [vmem:[%s478 + $0x18] sm:$0xff]
        %v573 = vpack.c.bf16 %v571, %v569
        %v574 = vpack.c.bf16 %v572, %v570
        %v575 = vld [vmem:[#allocation7] sm:$0xff]
        %v576 = vld [vmem:[#allocation7 + $0x8] sm:$0xff]
        %v577 = vld [vmem:[#allocation7 + $0x10] sm:$0xff]
        %v578 = vld [vmem:[#allocation7 + $0x18] sm:$0xff]
        %v579 = vld [vmem:[#allocation7 + $0x20] sm:$0xff]
        %v580 = vld [vmem:[#allocation7 + $0x28] sm:$0xff]
        %v581 = vld [vmem:[#allocation7 + $0x30] sm:$0xff]
        %v582 = vld [vmem:[#allocation7 + $0x38] sm:$0xff]
        %v583 = vld [vmem:[#allocation7 + $0x40] sm:$0xff]
        %v584 = vld [vmem:[#allocation7 + $0x48] sm:$0xff]
        %v585 = vld [vmem:[#allocation7 + $0x50] sm:$0xff]
        %v586 = vld [vmem:[#allocation7 + $0x58] sm:$0xff]
        %v587 = vld [vmem:[#allocation7 + $0x60] sm:$0xff]
        %v588 = vld [vmem:[#allocation7 + $0x68] sm:$0xff]
        %v589 = vld [vmem:[#allocation7 + $0x70] sm:$0xff]
        %v590 = vld [vmem:[#allocation7 + $0x78] sm:$0xff]
        %v591 = vpack.c.bf16 %v576, %v575
        %v592 = vpack.c.bf16 %v578, %v577
        %v593 = vpack.c.bf16 %v580, %v579
        %v594 = vpack.c.bf16 %v582, %v581
        %v595 = vpack.c.bf16 %v584, %v583
        %v596 = vpack.c.bf16 %v586, %v585
        %v597 = vpack.c.bf16 %v588, %v587
        %v598 = vpack.c.bf16 %v590, %v589
        %v599 = vld [vmem:[#allocation8] sm:$0xff]
        %v600 = vld [vmem:[#allocation8 + $0x8] sm:$0xff]
        %v601 = vld [vmem:[#allocation8 + $0x10] sm:$0xff]
        %v602 = vld [vmem:[#allocation8 + $0x18] sm:$0xff]
        %v603 = vld [vmem:[#allocation8 + $0x20] sm:$0xff]
        %v604 = vld [vmem:[#allocation8 + $0x28] sm:$0xff]
        %v605 = vld [vmem:[#allocation8 + $0x30] sm:$0xff]
        %v606 = vld [vmem:[#allocation8 + $0x38] sm:$0xff]
        %v607 = vld [vmem:[#allocation8 + $0x40] sm:$0xff]
        %v608 = vld [vmem:[#allocation8 + $0x48] sm:$0xff]
        %v609 = vld [vmem:[#allocation8 + $0x50] sm:$0xff]
        %v610 = vld [vmem:[#allocation8 + $0x58] sm:$0xff]
        %v611 = vld [vmem:[#allocation8 + $0x60] sm:$0xff]
        %v612 = vld [vmem:[#allocation8 + $0x68] sm:$0xff]
        %v613 = vld [vmem:[#allocation8 + $0x70] sm:$0xff]
        %v614 = vld [vmem:[#allocation8 + $0x78] sm:$0xff]
        %v615 = vld [vmem:[#allocation8 + $0x80] sm:$0xff]
        %v616 = vld [vmem:[#allocation8 + $0x88] sm:$0xff]
        %v617 = vld [vmem:[#allocation8 + $0x90] sm:$0xff]
        %v618 = vld [vmem:[#allocation8 + $0x98] sm:$0xff]
        %v619 = vld [vmem:[#allocation8 + $0xa0] sm:$0xff]
        %v620 = vld [vmem:[#allocation8 + $0xa8] sm:$0xff]
        %v621 = vld [vmem:[#allocation8 + $0xb0] sm:$0xff]
        %v622 = vld [vmem:[#allocation8 + $0xb8] sm:$0xff]
        %v623 = vld [vmem:[#allocation8 + $0xc0] sm:$0xff]
        %v624 = vld [vmem:[#allocation8 + $0xc8] sm:$0xff]
        %v625 = vld [vmem:[#allocation8 + $0xd0] sm:$0xff]
        %v626 = vld [vmem:[#allocation8 + $0xd8] sm:$0xff]
        %v627 = vld [vmem:[#allocation8 + $0xe0] sm:$0xff]
        %v628 = vld [vmem:[#allocation8 + $0xe8] sm:$0xff]
        %v629 = vld [vmem:[#allocation8 + $0xf0] sm:$0xff]
        %v630 = vld [vmem:[#allocation8 + $0xf8] sm:$0xff]
        %v631 = vpack.c.bf16 %v600, %v599
        %v632 = vpack.c.bf16 %v602, %v601
        %v633 = vpack.c.bf16 %v604, %v603
        %v634 = vpack.c.bf16 %v606, %v605
        %v635 = vpack.c.bf16 %v608, %v607
        %v636 = vpack.c.bf16 %v610, %v609
        %v637 = vpack.c.bf16 %v612, %v611
        %v638 = vpack.c.bf16 %v614, %v613
        %v639 = vpack.c.bf16 %v616, %v615
        %v640 = vpack.c.bf16 %v618, %v617
        %v641 = vpack.c.bf16 %v620, %v619
        %v642 = vpack.c.bf16 %v622, %v621
        %v643 = vpack.c.bf16 %v624, %v623
        %v644 = vpack.c.bf16 %v626, %v625
        %v645 = vpack.c.bf16 %v628, %v627
        %v646 = vpack.c.bf16 %v630, %v629
        %v647 = vld [vmem:[#allocation11] sm:$0xff]
        %v648 = vld [vmem:[#allocation11 + $0x8] sm:$0xff]
        %v649 = vld [vmem:[#allocation11 + $0x10] sm:$0xff]
        %v650 = vld [vmem:[#allocation11 + $0x18] sm:$0xff]
        %v651 = vld [vmem:[#allocation11 + $0x20] sm:$0xff]
        %v652 = vld [vmem:[#allocation11 + $0x28] sm:$0xff]
        %v653 = vld [vmem:[#allocation11 + $0x30] sm:$0xff]
        %v654 = vld [vmem:[#allocation11 + $0x38] sm:$0xff]
        %v655 = vld [vmem:[#allocation11 + $0x40] sm:$0xff]
        %v656 = vld [vmem:[#allocation11 + $0x48] sm:$0xff]
        %v657 = vld [vmem:[#allocation11 + $0x50] sm:$0xff]
        %v658 = vld [vmem:[#allocation11 + $0x58] sm:$0xff]
        %v659 = vld [vmem:[#allocation11 + $0x60] sm:$0xff]
        %v660 = vld [vmem:[#allocation11 + $0x68] sm:$0xff]
        %v661 = vld [vmem:[#allocation11 + $0x70] sm:$0xff]
        %v662 = vld [vmem:[#allocation11 + $0x78] sm:$0xff]
        %v663 = vpack.c.bf16 %v648, %v647
        %v664 = vpack.c.bf16 %v650, %v649
        %v665 = vpack.c.bf16 %v652, %v651
        %v666 = vpack.c.bf16 %v654, %v653
        %v667 = vpack.c.bf16 %v656, %v655
        %v668 = vpack.c.bf16 %v658, %v657
        %v669 = vpack.c.bf16 %v660, %v659
        %v670 = vpack.c.bf16 %v662, %v661
        %v671 = vld [vmem:[#allocation10] sm:$0xff]
        %v672 = vld [vmem:[#allocation10 + $0x8] sm:$0x3]
        %v673 = vpack.c.bf16 %v672, %v671
        %v674 = vld [vmem:[%s3] sm:$0x1]
        %v675 = vld [vmem:[%s5] sm:$0x1]
        %v676 = vld [vmem:[%s9] sm:$0x1]
        %v677 = vld [vmem:[%s7] sm:$0x1]
        %v679 = vlaneseq
        %v680 = vshrl.u32 %v679, 7
        %v681 = vsub.s32 0, %v680
        %v682 = vrot.slane %v674, %v681
        %684 = vmatprep.subr.bf16.mxu0 0
        %685 = vmatpush1.bf16.msra.mxu0 %v598
        %686 = vmatprep.subr.bf16.mxu0 0
        %687 = vmatpush1.bf16.msra.mxu0 %v597
        %688 = vmatprep.subr.bf16.mxu0 0
        %689 = vmatpush1.bf16.msra.mxu0 %v596
        %690 = vmatprep.subr.bf16.mxu0 0
        %691 = vmatpush1.bf16.msra.mxu0 %v595
        %692 = vmatprep.subr.bf16.mxu0 0
        %693 = vmatpush1.bf16.msra.mxu0 %v594
        %694 = vmatprep.subr.bf16.mxu0 0
        %695 = vmatpush1.bf16.msra.mxu0 %v593
        %696 = vmatprep.subr.bf16.mxu0 0
        %697 = vmatpush1.bf16.msra.mxu0 %v592
        %698 = vmatprep.subr.bf16.mxu0 0
        %699 = vmatpush1.bf16.msra.mxu0 %v591
        %700 = vmatprep.subr.bf16.mxu0 0
        %701 = vmatpush2.bf16.msra.mxu0 0
        %702 = vmatprep.subr.bf16.mxu0 0
        %703 = vmatpush2.bf16.msra.mxu0 0
        %704 = vmatprep.subr.bf16.mxu0 0
        %705 = vmatpush2.bf16.msra.mxu0 0
        %706 = vmatprep.subr.bf16.mxu0 0
        %707 = vmatpush2.bf16.msra.mxu0 0
        %708 = vmatprep.subr.bf16.mxu0 0
        %709 = vmatpush2.bf16.msra.mxu0 0
        %710 = vmatprep.subr.bf16.mxu0 0
        %711 = vmatpush2.bf16.msra.mxu0 0
        %712 = vmatprep.subr.bf16.mxu0 0
        %713 = vmatpush2.bf16.msra.mxu0 0
        %714 = vmatprep.subr.bf16.mxu0 0
        %715 = vmatpush2.bf16.msra.mxu0 0
        %716 = vmatprep.mubr.bf16.mxu0 0
        %717 = vmatmul.mubr.bf16.gmra.mxu0 %v567
        %v718 = vpop.f32.mrf.mxu0
        %v719 = vadd.f32 %v682, %v718
        %v720 = vpop.f32.mrf.mxu0
        %v721 = vpop.f32.mrf.mxu0
        %v722 = vadd.f32 %v682, %v721
        %v723 = vpop.f32.mrf.mxu0
        %724 = vmatprep.mubr.bf16.mxu0 0
        %725 = vmatmul.mubr.bf16.gmra.mxu0 %v568
        %v726 = vpop.f32.mrf.mxu0
        %v727 = vadd.f32 %v682, %v726
        %v728 = vpop.f32.mrf.mxu0
        %v729 = vpop.f32.mrf.mxu0
        %v730 = vadd.f32 %v682, %v729
        %v731 = vpop.f32.mrf.mxu0
        %732 = vdwg.mxu0
        %v734 = vlaneseq
        %v735 = vshrl.u32 %v734, 7
        %v736 = vsub.s32 0, %v735
        %v737 = vrot.slane %v675, %v736
        %739 = vmatprep.subr.bf16.mxu0 0
        %740 = vmatpush1.bf16.msra.mxu0 %v638
        %741 = vmatprep.subr.bf16.mxu0 0
        %742 = vmatpush1.bf16.msra.mxu0 %v637
        %743 = vmatprep.subr.bf16.mxu0 0
        %744 = vmatpush1.bf16.msra.mxu0 %v636
        %745 = vmatprep.subr.bf16.mxu0 0
        %746 = vmatpush1.bf16.msra.mxu0 %v635
        %747 = vmatprep.subr.bf16.mxu0 0
        %748 = vmatpush1.bf16.msra.mxu0 %v634
        %749 = vmatprep.subr.bf16.mxu0 0
        %750 = vmatpush1.bf16.msra.mxu0 %v633
        %751 = vmatprep.subr.bf16.mxu0 0
        %752 = vmatpush1.bf16.msra.mxu0 %v632
        %753 = vmatprep.subr.bf16.mxu0 0
        %754 = vmatpush1.bf16.msra.mxu0 %v631
        %755 = vmatprep.subr.bf16.mxu0 0
        %756 = vmatpush2.bf16.msra.mxu0 %v646
        %757 = vmatprep.subr.bf16.mxu0 0
        %758 = vmatpush2.bf16.msra.mxu0 %v645
        %759 = vmatprep.subr.bf16.mxu0 0
        %760 = vmatpush2.bf16.msra.mxu0 %v644
        %761 = vmatprep.subr.bf16.mxu0 0
        %762 = vmatpush2.bf16.msra.mxu0 %v643
        %763 = vmatprep.subr.bf16.mxu0 0
        %764 = vmatpush2.bf16.msra.mxu0 %v642
        %765 = vmatprep.subr.bf16.mxu0 0
        %766 = vmatpush2.bf16.msra.mxu0 %v641
        %767 = vmatprep.subr.bf16.mxu0 0
        %768 = vmatpush2.bf16.msra.mxu0 %v640
        %769 = vmatprep.subr.bf16.mxu0 0
        %770 = vmatpush2.bf16.msra.mxu0 %v639
        %771 = vmatprep.mubr.bf16.mxu0 %v574
        %772 = vmatmul.mubr.bf16.gmra.mxu0 %v573
        %v773 = vpop.f32.mrf.mxu0
        %v774 = vadd.f32 %v737, %v773
        %v775 = vpop.f32.mrf.mxu0
        %v776 = vpop.f32.mrf.mxu0
        %v777 = vadd.f32 %v737, %v776
        %v778 = vpop.f32.mrf.mxu0
        %779 = vdwg.mxu0
        %v780 = vpack.c.bf16 %v722, %v719
        %v781 = vpack.c.bf16 %v730, %v727
        %782 = vmatprep.subr.bf16.mxu0 0
        %783 = vmatpush1.bf16.xpose.msra.mxu0 0
        %784 = vmatprep.subr.bf16.mxu0 0
        %785 = vmatpush1.bf16.xpose.msra.mxu0 0
        %786 = vmatprep.subr.bf16.mxu0 0
        %787 = vmatpush1.bf16.xpose.msra.mxu0 0
        %788 = vmatprep.subr.bf16.mxu0 0
        %789 = vmatpush1.bf16.xpose.msra.mxu0 0
        %790 = vmatprep.subr.bf16.mxu0 0
        %791 = vmatpush1.bf16.xpose.msra.mxu0 0
        %792 = vmatprep.subr.bf16.mxu0 0
        %793 = vmatpush1.bf16.xpose.msra.mxu0 0
        %794 = vmatprep.subr.bf16.mxu0 0
        %795 = vmatpush1.bf16.xpose.msra.mxu0 0
        %796 = vmatprep.subr.bf16.mxu0 0
        %797 = vmatpush1.bf16.xpose.msra.mxu0 %v673
        %798 = vmatprep.subr.bf16.mxu0 0
        %799 = vmatpush2.bf16.xpose.msra.mxu0 0
        %800 = vmatprep.subr.bf16.mxu0 0
        %801 = vmatpush2.bf16.xpose.msra.mxu0 0
        %802 = vmatprep.subr.bf16.mxu0 0
        %803 = vmatpush2.bf16.xpose.msra.mxu0 0
        %804 = vmatprep.subr.bf16.mxu0 0
        %805 = vmatpush2.bf16.xpose.msra.mxu0 0
        %806 = vmatprep.subr.bf16.mxu0 0
        %807 = vmatpush2.bf16.xpose.msra.mxu0 0
        %808 = vmatprep.subr.bf16.mxu0 0
        %809 = vmatpush2.bf16.xpose.msra.mxu0 0
        %810 = vmatprep.subr.bf16.mxu0 0
        %811 = vmatpush2.bf16.xpose.msra.mxu0 0
        %812 = vmatprep.subr.bf16.mxu0 0
        %813 = vmatpush2.bf16.xpose.msra.mxu0 0
        %814 = vmatprep.mubr.bf16.mxu0 0
        %815 = vmatmul.mubr.bf16.gmra.mxu0 %v780
        %v816 = vpop.f32.mrf.mxu0
        %v817 = vadd.f32 0.0, %v816
        %v818 = vpop.f32.mrf.mxu0
        %v819 = vpop.f32.mrf.mxu0
        %v820 = vadd.f32 0.0, %v819
        %v821 = vpop.f32.mrf.mxu0
        %822 = vmatprep.mubr.bf16.mxu0 0
        %823 = vmatmul.mubr.bf16.gmra.mxu0 %v781
        %v824 = vpop.f32.mrf.mxu0
        %v825 = vadd.f32 0.0, %v824
        %v826 = vpop.f32.mrf.mxu0
        %v827 = vpop.f32.mrf.mxu0
        %v828 = vadd.f32 0.0, %v827
        %v829 = vpop.f32.mrf.mxu0
        %830 = vdwg.mxu0
        %vm831 = vcmask 80896
        %v832 = vsel %vm831, %v817, -inf
        %833 = vmax.xlane.f32.xlu0 %v832
        %v834 = vpop.xlane.xlu0 %833
        %v835 = vsel %vm831, %v820, -inf
        %836 = vmax.xlane.f32.xlu0 %v835
        %v837 = vpop.xlane.xlu0 %836
        %v838 = vsel %vm831, %v825, -inf
        %839 = vmax.xlane.f32.xlu0 %v838
        %v840 = vpop.xlane.xlu0 %839
        %v841 = vsel %vm831, %v828, -inf
        %842 = vmax.xlane.f32.xlu0 %v841
        %v843 = vpop.xlane.xlu0 %842
        %v844 = vsub.f32 %v817, %v834
        %v845 = vsub.f32 %v820, %v837
        %v846 = vsub.f32 %v825, %v840
        %v847 = vsub.f32 %v828, %v843
        %v848 = vmul.f32 %v844, 1.442695
        %v849 = vpow.pop %v848
        %v850 = vmul.f32 %v845, 1.442695
        %v851 = vpow.pop %v850
        %v852 = vmul.f32 %v846, 1.442695
        %v853 = vpow.pop %v852
        %v854 = vmul.f32 %v847, 1.442695
        %v855 = vpow.pop %v854
        %v856 = vsel %vm831, %v849, 0.0
        %857 = vadd.xlane.f32.xlu0 %v856
        %v858 = vpop.xlane.xlu0 %857
        %v859 = vsel %vm831, %v851, 0.0
        %860 = vadd.xlane.f32.xlu0 %v859
        %v861 = vpop.xlane.xlu0 %860
        %v862 = vsel %vm831, %v853, 0.0
        %863 = vadd.xlane.f32.xlu0 %v862
        %v864 = vpop.xlane.xlu0 %863
        %v865 = vsel %vm831, %v855, 0.0
        %866 = vadd.xlane.f32.xlu0 %v865
        %v867 = vpop.xlane.xlu0 %866
        %v868 = vrcp.pop %v858
        %v869 = vrcp.pop %v861
        %v870 = vrcp.pop %v864
        %v871 = vrcp.pop %v867
        %v872 = vmul.f32 %v849, %v868
        %v873 = vmul.f32 %v851, %v869
        %v874 = vmul.f32 %v853, %v870
        %v875 = vmul.f32 %v855, %v871
        %v877 = vlaneseq
        %v878 = vshrl.u32 %v877, 7
        %v879 = vsub.s32 0, %v878
        %v880 = vrot.slane %v677, %v879
        %v882 = vsub.f32 %v719, %v880
        %v883 = vsub.f32 %v722, %v880
        %v884 = vsub.f32 %v727, %v880
        %v885 = vsub.f32 %v730, %v880
        %v887 = vlaneseq
        %v888 = vshrl.u32 %v887, 7
        %v889 = vsub.s32 0, %v888
        %v890 = vrot.slane %v676, %v889
        %892 = vmatprep.subr.bf16.mxu0 0
        %893 = vmatpush1.bf16.msra.mxu0 %v670
        %894 = vmatprep.subr.bf16.mxu0 0
        %895 = vmatpush1.bf16.msra.mxu0 %v669
        %896 = vmatprep.subr.bf16.mxu0 0
        %897 = vmatpush1.bf16.msra.mxu0 %v668
        %898 = vmatprep.subr.bf16.mxu0 0
        %899 = vmatpush1.bf16.msra.mxu0 %v667
        %900 = vmatprep.subr.bf16.mxu0 0
        %901 = vmatpush1.bf16.msra.mxu0 %v666
        %902 = vmatprep.subr.bf16.mxu0 0
        %903 = vmatpush1.bf16.msra.mxu0 %v665
        %904 = vmatprep.subr.bf16.mxu0 0
        %905 = vmatpush1.bf16.msra.mxu0 %v664
        %906 = vmatprep.subr.bf16.mxu0 0
        %907 = vmatpush1.bf16.msra.mxu0 %v663
        %908 = vmatprep.subr.bf16.mxu0 0
        %909 = vmatpush2.bf16.msra.mxu0 0
        %910 = vmatprep.subr.bf16.mxu0 0
        %911 = vmatpush2.bf16.msra.mxu0 0
        %912 = vmatprep.subr.bf16.mxu0 0
        %913 = vmatpush2.bf16.msra.mxu0 0
        %914 = vmatprep.subr.bf16.mxu0 0
        %915 = vmatpush2.bf16.msra.mxu0 0
        %916 = vmatprep.subr.bf16.mxu0 0
        %917 = vmatpush2.bf16.msra.mxu0 0
        %918 = vmatprep.subr.bf16.mxu0 0
        %919 = vmatpush2.bf16.msra.mxu0 0
        %920 = vmatprep.subr.bf16.mxu0 0
        %921 = vmatpush2.bf16.msra.mxu0 0
        %922 = vmatprep.subr.bf16.mxu0 0
        %923 = vmatpush2.bf16.msra.mxu0 0
        %924 = vmatprep.mubr.bf16.mxu0 0
        %925 = vmatmul.mubr.bf16.gmra.mxu0 %v780
        %v926 = vpop.f32.mrf.mxu0
        %v927 = vadd.f32 %v890, %v926
        %v928 = vpop.f32.mrf.mxu0
        %v929 = vpop.f32.mrf.mxu0
        %v930 = vadd.f32 %v890, %v929
        %v931 = vpop.f32.mrf.mxu0
        %932 = vmatprep.mubr.bf16.mxu0 0
        %933 = vmatmul.mubr.bf16.gmra.mxu0 %v781
        %v934 = vpop.f32.mrf.mxu0
        %v935 = vadd.f32 %v890, %v934
        %v936 = vpop.f32.mrf.mxu0
        %v937 = vpop.f32.mrf.mxu0
        %v938 = vadd.f32 %v890, %v937
        %v939 = vpop.f32.mrf.mxu0
        %940 = vdwg.mxu0
        %v941 = vpack.c.bf16 %v777, %v774
        %942 = vmatprep.subr.bf16.mxu0 0
        %943 = vmatpush1.bf16.msra.mxu0 %v670
        %944 = vmatprep.subr.bf16.mxu0 0
        %945 = vmatpush1.bf16.msra.mxu0 %v669
        %946 = vmatprep.subr.bf16.mxu0 0
        %947 = vmatpush1.bf16.msra.mxu0 %v668
        %948 = vmatprep.subr.bf16.mxu0 0
        %949 = vmatpush1.bf16.msra.mxu0 %v667
        %950 = vmatprep.subr.bf16.mxu0 0
        %951 = vmatpush1.bf16.msra.mxu0 %v666
        %952 = vmatprep.subr.bf16.mxu0 0
        %953 = vmatpush1.bf16.msra.mxu0 %v665
        %954 = vmatprep.subr.bf16.mxu0 0
        %955 = vmatpush1.bf16.msra.mxu0 %v664
        %956 = vmatprep.subr.bf16.mxu0 0
        %957 = vmatpush1.bf16.msra.mxu0 %v663
        %958 = vmatprep.subr.bf16.mxu0 0
        %959 = vmatpush2.bf16.msra.mxu0 0
        %960 = vmatprep.subr.bf16.mxu0 0
        %961 = vmatpush2.bf16.msra.mxu0 0
        %962 = vmatprep.subr.bf16.mxu0 0
        %963 = vmatpush2.bf16.msra.mxu0 0
        %964 = vmatprep.subr.bf16.mxu0 0
        %965 = vmatpush2.bf16.msra.mxu0 0
        %966 = vmatprep.subr.bf16.mxu0 0
        %967 = vmatpush2.bf16.msra.mxu0 0
        %968 = vmatprep.subr.bf16.mxu0 0
        %969 = vmatpush2.bf16.msra.mxu0 0
        %970 = vmatprep.subr.bf16.mxu0 0
        %971 = vmatpush2.bf16.msra.mxu0 0
        %972 = vmatprep.subr.bf16.mxu0 0
        %973 = vmatpush2.bf16.msra.mxu0 0
        %974 = vmatprep.mubr.bf16.mxu0 0
        %975 = vmatmul.mubr.bf16.gmra.mxu0 %v941
        %v976 = vpop.f32.mrf.mxu0
        %v977 = vadd.f32 %v890, %v976
        %v978 = vpop.f32.mrf.mxu0
        %v979 = vpop.f32.mrf.mxu0
        %v980 = vadd.f32 %v890, %v979
        %v981 = vpop.f32.mrf.mxu0
        %982 = vdwg.mxu0
        %983 = vst [vmem:[%s535] sm:$0xff] %v927
        %984 = vst [vmem:[%s535 + $0x8] sm:$0xff] %v930
        %985 = vst [vmem:[%s535 + $0x10] sm:$0xff] %v935
        %986 = vst [vmem:[%s535 + $0x18] sm:$0xff] %v938
        %987 = vst [vmem:[%s542] sm:$0xff] %v977
        %988 = vst [vmem:[%s542 + $0x8] sm:$0xff] %v980
        %989 = vxpose.xlu0.b32.start [1/16] %v872, 128
        %990 = vxpose.xlu0.b32.cont [2/16] %v873, 128
        %991 = vxpose.xlu0.b32.cont [3/16] 0.0, 128
        %992 = vxpose.xlu0.b32.cont [4/16] 0.0, 128
        %993 = vxpose.xlu0.b32.cont [5/16] 0.0, 128
        %994 = vxpose.xlu0.b32.cont [6/16] 0.0, 128
        %995 = vxpose.xlu0.b32.cont [7/16] 0.0, 128
        %996 = vxpose.xlu0.b32.cont [8/16] 0.0, 128
        %997 = vxpose.xlu0.b32.cont [9/16] 0.0, 128
        %998 = vxpose.xlu0.b32.cont [10/16] 0.0, 128
        %999 = vxpose.xlu0.b32.cont [11/16] 0.0, 128
        %1000 = vxpose.xlu0.b32.cont [12/16] 0.0, 128
        %1001 = vxpose.xlu0.b32.cont [13/16] 0.0, 128
        %1002 = vxpose.xlu0.b32.cont [14/16] 0.0, 128
        %1003 = vxpose.xlu0.b32.cont [15/16] 0.0, 128
        %1004 = vxpose.xlu0.b32.end [16/16] 0.0, 128
        %v1005 = vpop.trf.xlu0
        %v1006 = vpop.trf.xlu0
        %v1007 = vpop.trf.xlu0
        %v1008 = vpop.trf.xlu0
        %v1009 = vpop.trf.xlu0
        %v1010 = vpop.trf.xlu0
        %v1011 = vpop.trf.xlu0
        %v1012 = vpop.trf.xlu0
        %v1013 = vpop.trf.xlu0
        %v1014 = vpop.trf.xlu0
        %v1015 = vpop.trf.xlu0
        %v1016 = vpop.trf.xlu0
        %v1017 = vpop.trf.xlu0
        %v1018 = vpop.trf.xlu0
        %v1019 = vpop.trf.xlu0
        %v1020 = vpop.trf.xlu0
        %vm1021 = vcmask 130048
        %v1023 = vsel %vm1021, %v1005, 0
        %v1026 = vsel %vm1021, %v1006, 0
        %1028 = vmatprep.subr.mxu0 0.0
        %1029 = vmatpush1.msra.mxu0 0.0
        %1030 = vmatprep.subr.mxu0 0.0
        %1031 = vmatpush1.msra.mxu0 0.0
        %1032 = vmatprep.subr.mxu0 0.0
        %1033 = vmatpush1.msra.mxu0 0.0
        %1034 = vmatprep.subr.mxu0 0.0
        %1035 = vmatpush1.msra.mxu0 0.0
        %1036 = vmatprep.subr.mxu0 0.0
        %1037 = vmatpush1.msra.mxu0 0.0
        %1038 = vmatprep.subr.mxu0 0.0
        %1039 = vmatpush1.msra.mxu0 0.0
        %1040 = vmatprep.subr.mxu0 0.0
        %1041 = vmatpush1.msra.mxu0 0.0
        %1042 = vmatprep.subr.mxu0 0.0
        %1043 = vmatpush1.msra.mxu0 0.0
        %1044 = vmatprep.subr.mxu0 0.0
        %1045 = vmatpush1.msra.mxu0 0.0
        %1046 = vmatprep.subr.mxu0 0.0
        %1047 = vmatpush1.msra.mxu0 0.0
        %1048 = vmatprep.subr.mxu0 0.0
        %1049 = vmatpush1.msra.mxu0 0.0
        %1050 = vmatprep.subr.mxu0 0.0
        %1051 = vmatpush1.msra.mxu0 0.0
        %1052 = vmatprep.subr.mxu0 0.0
        %1053 = vmatpush1.msra.mxu0 0.0
        %1054 = vmatprep.subr.mxu0 0.0
        %1055 = vmatpush1.msra.mxu0 0.0
        %1056 = vmatprep.subr.mxu0 0.0
        %1057 = vmatpush1.msra.mxu0 %v883
        %1058 = vmatprep.subr.mxu0 0.0
        %1059 = vmatpush1.msra.mxu0 %v882
        %1060 = vmatprep.subr.mxu0 0.0
        %1061 = vmatpush2.msra.mxu0 0.0
        %1062 = vmatprep.subr.mxu0 0.0
        %1063 = vmatpush2.msra.mxu0 0.0
        %1064 = vmatprep.subr.mxu0 0.0
        %1065 = vmatpush2.msra.mxu0 0.0
        %1066 = vmatprep.subr.mxu0 0.0
        %1067 = vmatpush2.msra.mxu0 0.0
        %1068 = vmatprep.subr.mxu0 0.0
        %1069 = vmatpush2.msra.mxu0 0.0
        %1070 = vmatprep.subr.mxu0 0.0
        %1071 = vmatpush2.msra.mxu0 0.0
        %1072 = vmatprep.subr.mxu0 0.0
        %1073 = vmatpush2.msra.mxu0 0.0
        %1074 = vmatprep.subr.mxu0 0.0
        %1075 = vmatpush2.msra.mxu0 0.0
        %1076 = vmatprep.subr.mxu0 0.0
        %1077 = vmatpush2.msra.mxu0 0.0
        %1078 = vmatprep.subr.mxu0 0.0
        %1079 = vmatpush2.msra.mxu0 0.0
        %1080 = vmatprep.subr.mxu0 0.0
        %1081 = vmatpush2.msra.mxu0 0.0
        %1082 = vmatprep.subr.mxu0 0.0
        %1083 = vmatpush2.msra.mxu0 0.0
        %1084 = vmatprep.subr.mxu0 0.0
        %1085 = vmatpush2.msra.mxu0 0.0
        %1086 = vmatprep.subr.mxu0 0.0
        %1087 = vmatpush2.msra.mxu0 0.0
        %1088 = vmatprep.subr.mxu0 0.0
        %1089 = vmatpush2.msra.mxu0 0.0
        %1090 = vmatprep.subr.mxu0 0.0
        %1091 = vmatpush2.msra.mxu0 0.0
        %1092 = vmatprep.mubr.f32.mxu0 0.0
        %1093 = vmatmul.mubr.f32.gmra.mxu0 %v1023
        %v1094 = vpop.f32.mrf.mxu0
        %v1095 = vadd.f32 0.0, %v1094
        %v1096 = vpop.f32.mrf.mxu0
        %1097 = vmatprep.mubr.f32.mxu0 0.0
        %1098 = vmatmul.mubr.f32.gmra.mxu0 %v1026
        %v1099 = vpop.f32.mrf.mxu0
        %v1100 = vadd.f32 0.0, %v1099
        %v1101 = vpop.f32.mrf.mxu0
        %1102 = vdwg.mxu0
        %v1103 = vmul.f32 %v1095, %v1095
        %v1104 = vmul.f32 %v1100, %v1100
        %1105 = vadd.xlane.f32.xlu0 %v1103
        %v1106 = vpop.xlane.xlu0 %1105
        %vm1107 = vcmask 1041408
        %v1108 = vsel %vm1107, %v1104, 0.0
        %1109 = vadd.xlane.f32.xlu0 %v1108
        %v1110 = vpop.xlane.xlu0 %1109
        %v1111 = vmax.f32 %v1106, 1e-24
        %v1112 = vmax.f32 %v1110, 1e-24
        %v1113 = vrsqrt.pop %v1111
        %v1114 = vrsqrt.pop %v1112
        %v1115 = vmul.f32 %v1095, %v1113
        %v1116 = vmul.f32 %v1100, %v1114
        %v1117 = vpack.c.bf16 %v1116, %v1115
        %1118 = vmatprep.subr.bf16.mxu0 0
        %1119 = vmatpush1.bf16.msra.mxu0 %v670
        %1120 = vmatprep.subr.bf16.mxu0 0
        %1121 = vmatpush1.bf16.msra.mxu0 %v669
        %1122 = vmatprep.subr.bf16.mxu0 0
        %1123 = vmatpush1.bf16.msra.mxu0 %v668
        %1124 = vmatprep.subr.bf16.mxu0 0
        %1125 = vmatpush1.bf16.msra.mxu0 %v667
        %1126 = vmatprep.subr.bf16.mxu0 0
        %1127 = vmatpush1.bf16.msra.mxu0 %v666
        %1128 = vmatprep.subr.bf16.mxu0 0
        %1129 = vmatpush1.bf16.msra.mxu0 %v665
        %1130 = vmatprep.subr.bf16.mxu0 0
        %1131 = vmatpush1.bf16.msra.mxu0 %v664
        %1132 = vmatprep.subr.bf16.mxu0 0
        %1133 = vmatpush1.bf16.msra.mxu0 %v663
        %1134 = vmatprep.subr.bf16.mxu0 0
        %1135 = vmatpush2.bf16.msra.mxu0 0
        %1136 = vmatprep.subr.bf16.mxu0 0
        %1137 = vmatpush2.bf16.msra.mxu0 0
        %1138 = vmatprep.subr.bf16.mxu0 0
        %1139 = vmatpush2.bf16.msra.mxu0 0
        %1140 = vmatprep.subr.bf16.mxu0 0
        %1141 = vmatpush2.bf16.msra.mxu0 0
        %1142 = vmatprep.subr.bf16.mxu0 0
        %1143 = vmatpush2.bf16.msra.mxu0 0
        %1144 = vmatprep.subr.bf16.mxu0 0
        %1145 = vmatpush2.bf16.msra.mxu0 0
        %1146 = vmatprep.subr.bf16.mxu0 0
        %1147 = vmatpush2.bf16.msra.mxu0 0
        %1148 = vmatprep.subr.bf16.mxu0 0
        %1149 = vmatpush2.bf16.msra.mxu0 0
        %1150 = vmatprep.mubr.bf16.mxu0 0
        %1151 = vmatmul.mubr.bf16.gmra.mxu0 %v1117
        %v1152 = vpop.f32.mrf.mxu0
        %v1153 = vadd.f32 %v890, %v1152
        %v1154 = vpop.f32.mrf.mxu0
        %v1155 = vpop.f32.mrf.mxu0
        %v1156 = vadd.f32 %v890, %v1155
        %v1157 = vpop.f32.mrf.mxu0
        %1158 = vdwg.mxu0
        %1159 = vst [vmem:[%s560] sm:$0xff] %v1153
        %1160 = vst [vmem:[%s560 + $0x8] sm:$0x3] %v1156
        %1161 = vxpose.xlu0.b32.start [1/16] %v874, 128
        %1162 = vxpose.xlu0.b32.cont [2/16] %v875, 128
        %1163 = vxpose.xlu0.b32.cont [3/16] 0.0, 128
        %1164 = vxpose.xlu0.b32.cont [4/16] 0.0, 128
        %1165 = vxpose.xlu0.b32.cont [5/16] 0.0, 128
        %1166 = vxpose.xlu0.b32.cont [6/16] 0.0, 128
        %1167 = vxpose.xlu0.b32.cont [7/16] 0.0, 128
        %1168 = vxpose.xlu0.b32.cont [8/16] 0.0, 128
        %1169 = vxpose.xlu0.b32.cont [9/16] 0.0, 128
        %1170 = vxpose.xlu0.b32.cont [10/16] 0.0, 128
        %1171 = vxpose.xlu0.b32.cont [11/16] 0.0, 128
        %1172 = vxpose.xlu0.b32.cont [12/16] 0.0, 128
        %1173 = vxpose.xlu0.b32.cont [13/16] 0.0, 128
        %1174 = vxpose.xlu0.b32.cont [14/16] 0.0, 128
        %1175 = vxpose.xlu0.b32.cont [15/16] 0.0, 128
        %1176 = vxpose.xlu0.b32.end [16/16] 0.0, 128
        %v1177 = vpop.trf.xlu0
        %v1178 = vpop.trf.xlu0
        %v1179 = vpop.trf.xlu0
        %v1180 = vpop.trf.xlu0
        %v1181 = vpop.trf.xlu0
        %v1182 = vpop.trf.xlu0
        %v1183 = vpop.trf.xlu0
        %v1184 = vpop.trf.xlu0
        %v1185 = vpop.trf.xlu0
        %v1186 = vpop.trf.xlu0
        %v1187 = vpop.trf.xlu0
        %v1188 = vpop.trf.xlu0
        %v1189 = vpop.trf.xlu0
        %v1190 = vpop.trf.xlu0
        %v1191 = vpop.trf.xlu0
        %v1192 = vpop.trf.xlu0
        %v1194 = vsel %vm1021, %v1177, 0
        %v1197 = vsel %vm1021, %v1178, 0
        %1199 = vmatprep.subr.mxu0 0.0
        %1200 = vmatpush1.msra.mxu0 0.0
        %1201 = vmatprep.subr.mxu0 0.0
        %1202 = vmatpush1.msra.mxu0 0.0
        %1203 = vmatprep.subr.mxu0 0.0
        %1204 = vmatpush1.msra.mxu0 0.0
        %1205 = vmatprep.subr.mxu0 0.0
        %1206 = vmatpush1.msra.mxu0 0.0
        %1207 = vmatprep.subr.mxu0 0.0
        %1208 = vmatpush1.msra.mxu0 0.0
        %1209 = vmatprep.subr.mxu0 0.0
        %1210 = vmatpush1.msra.mxu0 0.0
        %1211 = vmatprep.subr.mxu0 0.0
        %1212 = vmatpush1.msra.mxu0 0.0
        %1213 = vmatprep.subr.mxu0 0.0
        %1214 = vmatpush1.msra.mxu0 0.0
        %1215 = vmatprep.subr.mxu0 0.0
        %1216 = vmatpush1.msra.mxu0 0.0
        %1217 = vmatprep.subr.mxu0 0.0
        %1218 = vmatpush1.msra.mxu0 0.0
        %1219 = vmatprep.subr.mxu0 0.0
        %1220 = vmatpush1.msra.mxu0 0.0
        %1221 = vmatprep.subr.mxu0 0.0
        %1222 = vmatpush1.msra.mxu0 0.0
        %1223 = vmatprep.subr.mxu0 0.0
        %1224 = vmatpush1.msra.mxu0 0.0
        %1225 = vmatprep.subr.mxu0 0.0
        %1226 = vmatpush1.msra.mxu0 0.0
        %1227 = vmatprep.subr.mxu0 0.0
        %1228 = vmatpush1.msra.mxu0 %v885
        %1229 = vmatprep.subr.mxu0 0.0
        %1230 = vmatpush1.msra.mxu0 %v884
        %1231 = vmatprep.subr.mxu0 0.0
        %1232 = vmatpush2.msra.mxu0 0.0
        %1233 = vmatprep.subr.mxu0 0.0
        %1234 = vmatpush2.msra.mxu0 0.0
        %1235 = vmatprep.subr.mxu0 0.0
        %1236 = vmatpush2.msra.mxu0 0.0
        %1237 = vmatprep.subr.mxu0 0.0
        %1238 = vmatpush2.msra.mxu0 0.0
        %1239 = vmatprep.subr.mxu0 0.0
        %1240 = vmatpush2.msra.mxu0 0.0
        %1241 = vmatprep.subr.mxu0 0.0
        %1242 = vmatpush2.msra.mxu0 0.0
        %1243 = vmatprep.subr.mxu0 0.0
        %1244 = vmatpush2.msra.mxu0 0.0
        %1245 = vmatprep.subr.mxu0 0.0
        %1246 = vmatpush2.msra.mxu0 0.0
        %1247 = vmatprep.subr.mxu0 0.0
        %1248 = vmatpush2.msra.mxu0 0.0
        %1249 = vmatprep.subr.mxu0 0.0
        %1250 = vmatpush2.msra.mxu0 0.0
        %1251 = vmatprep.subr.mxu0 0.0
        %1252 = vmatpush2.msra.mxu0 0.0
        %1253 = vmatprep.subr.mxu0 0.0
        %1254 = vmatpush2.msra.mxu0 0.0
        %1255 = vmatprep.subr.mxu0 0.0
        %1256 = vmatpush2.msra.mxu0 0.0
        %1257 = vmatprep.subr.mxu0 0.0
        %1258 = vmatpush2.msra.mxu0 0.0
        %1259 = vmatprep.subr.mxu0 0.0
        %1260 = vmatpush2.msra.mxu0 0.0
        %1261 = vmatprep.subr.mxu0 0.0
        %1262 = vmatpush2.msra.mxu0 0.0
        %1263 = vmatprep.mubr.f32.mxu0 0.0
        %1264 = vmatmul.mubr.f32.gmra.mxu0 %v1194
        %v1265 = vpop.f32.mrf.mxu0
        %v1266 = vadd.f32 0.0, %v1265
        %v1267 = vpop.f32.mrf.mxu0
        %1268 = vmatprep.mubr.f32.mxu0 0.0
        %1269 = vmatmul.mubr.f32.gmra.mxu0 %v1197
        %v1270 = vpop.f32.mrf.mxu0
        %v1271 = vadd.f32 0.0, %v1270
        %v1272 = vpop.f32.mrf.mxu0
        %1273 = vdwg.mxu0
        %v1274 = vmul.f32 %v1266, %v1266
        %v1275 = vmul.f32 %v1271, %v1271
        %1276 = vadd.xlane.f32.xlu0 %v1274
        %v1277 = vpop.xlane.xlu0 %1276
        %v1278 = vsel %vm1107, %v1275, 0.0
        %1279 = vadd.xlane.f32.xlu0 %v1278
        %v1280 = vpop.xlane.xlu0 %1279
        %v1281 = vmax.f32 %v1277, 1e-24
        %v1282 = vmax.f32 %v1280, 1e-24
        %v1283 = vrsqrt.pop %v1281
        %v1284 = vrsqrt.pop %v1282
        %v1285 = vmul.f32 %v1266, %v1283
        %v1286 = vmul.f32 %v1271, %v1284
        %v1287 = vpack.c.bf16 %v1286, %v1285
        %1288 = vmatprep.subr.bf16.mxu0 0
        %1289 = vmatpush1.bf16.msra.mxu0 %v670
        %1290 = vmatprep.subr.bf16.mxu0 0
        %1291 = vmatpush1.bf16.msra.mxu0 %v669
        %1292 = vmatprep.subr.bf16.mxu0 0
        %1293 = vmatpush1.bf16.msra.mxu0 %v668
        %1294 = vmatprep.subr.bf16.mxu0 0
        %1295 = vmatpush1.bf16.msra.mxu0 %v667
        %1296 = vmatprep.subr.bf16.mxu0 0
        %1297 = vmatpush1.bf16.msra.mxu0 %v666
        %1298 = vmatprep.subr.bf16.mxu0 0
        %1299 = vmatpush1.bf16.msra.mxu0 %v665
        %1300 = vmatprep.subr.bf16.mxu0 0
        %1301 = vmatpush1.bf16.msra.mxu0 %v664
        %1302 = vmatprep.subr.bf16.mxu0 0
        %1303 = vmatpush1.bf16.msra.mxu0 %v663
        %1304 = vmatprep.subr.bf16.mxu0 0
        %1305 = vmatpush2.bf16.msra.mxu0 0
        %1306 = vmatprep.subr.bf16.mxu0 0
        %1307 = vmatpush2.bf16.msra.mxu0 0
        %1308 = vmatprep.subr.bf16.mxu0 0
        %1309 = vmatpush2.bf16.msra.mxu0 0
        %1310 = vmatprep.subr.bf16.mxu0 0
        %1311 = vmatpush2.bf16.msra.mxu0 0
        %1312 = vmatprep.subr.bf16.mxu0 0
        %1313 = vmatpush2.bf16.msra.mxu0 0
        %1314 = vmatprep.subr.bf16.mxu0 0
        %1315 = vmatpush2.bf16.msra.mxu0 0
        %1316 = vmatprep.subr.bf16.mxu0 0
        %1317 = vmatpush2.bf16.msra.mxu0 0
        %1318 = vmatprep.subr.bf16.mxu0 0
        %1319 = vmatpush2.bf16.msra.mxu0 0
        %1320 = vmatprep.mubr.bf16.mxu0 0
        %1321 = vmatmul.mubr.bf16.gmra.mxu0 %v1287
        %v1322 = vpop.f32.mrf.mxu0
        %v1323 = vadd.f32 %v890, %v1322
        %v1324 = vpop.f32.mrf.mxu0
        %v1325 = vpop.f32.mrf.mxu0
        %v1326 = vadd.f32 %v890, %v1325
        %v1327 = vpop.f32.mrf.mxu0
        %1328 = vdwg.mxu0
        %s1329 = scalar_lea.vmem %s560, 16
        %1330 = vst [vmem:[%s1329] sm:$0xff] %v1323
        %1331 = vst [vmem:[%s1329 + $0x8] sm:$0x3] %v1326
        %s1332 = sand.u32 %s266, 1
        %s1333 = scalar_lea.sflag [#allocation4], %s1332
        %s1334 = sand.u32 %s266, 1
        %s1335 = smul.addr %s1334, 32
        %s1336 = scalar_lea.vmem [#allocation13], %s1335
        %s1337 = sand.u32 %s292, 1
        %s1338 = scalar_lea.sflag [#allocation15], %s1337
        %s1339 = sand.u32 %s292, 1
        %s1340 = smul.addr %s1339, 16
        %s1341 = scalar_lea.vmem [#allocation14], %s1340
        %s1342 = smul.u32 2, %s38
        %p1343 = scmp.lt.s32.totalorder %s1342, 7
        %s1344 = scalar_select %p1343, %s1342, 7
        %s1345 = smul.addr %s1344, 2
        %s1346 = smul.addr %s1345, 8
        %s1347 = scalar_lea.vmem %s12, %s1346
        // Predicated region
        $region85: #{tpu_custom_call.1} parent=59 // pred_check
          %p1348 = pneg %p276
        $region86: #{tpu_custom_call.1} parent=59 // pred_check_branch
          %1350 = sbr.rel (%p1348) target = $region88
        $region87: #{tpu_custom_call.1} parent=59 // pred_region
          %s1351 = smul.u32 2, %s38
          %s1353 = ssub.s32 512, 512
          %1354 = vsyncadd %s1333, %s1353
          %s1355 = smul.addr %s1351, 2
          %s1356 = smul.addr %s1355, 128
          %s1357 = scalar_lea.hbm %s10, %s1356
          %s1358 = sshll.u32 %s1336, 4
          %s1359 = int_to_ptr.vmem [resolvable:$true] %s1358
          %1364 = dma.vmem_to_hbm [thread:$0]  %s1359, 512, %s1357, %s1333, 128, 128, 8
        $region88: #{tpu_custom_call.1} parent=59 // pred_fallthru
          _
        // Predicated region
        $region89: #{tpu_custom_call.1} parent=59 // pred_check
          %p1365 = pneg %p302
        $region90: #{tpu_custom_call.1} parent=59 // pred_check_branch
          %1367 = sbr.rel (%p1365) target = $region92
        $region91: #{tpu_custom_call.1} parent=59 // pred_region
          %s1368 = smul.u32 2, %s38
          %s1370 = ssub.s32 256, 256
          %1371 = vsyncadd %s1338, %s1370
          %s1372 = smul.addr %s1368, 128
          %s1373 = scalar_lea.hbm %s11, %s1372
          %s1374 = sshll.u32 %s1341, 4
          %s1375 = int_to_ptr.vmem [resolvable:$true] %s1374
          %1380 = dma.vmem_to_hbm [thread:$0]  %s1375, 256, %s1373, %s1338, 128, 128, 8
        $region92: #{tpu_custom_call.1} parent=59 // pred_fallthru
          _
        // Predicated region
        $region93: #{tpu_custom_call.1} parent=59 // pred_check
          %p1381 = pneg %p328
        $region94: #{tpu_custom_call.1} parent=59 // pred_check_branch
          %1383 = sbr.rel (%p1381) target = $region96
        $region95: #{tpu_custom_call.1} parent=59 // pred_region
          %s1384 = smul.u32 2, %s38
        $region96: #{tpu_custom_call.1} parent=59 // pred_fallthru
          _
      $region60: #{tpu_custom_call.1} parent=5 // pred_fallthru
        _
      %p1385 = scmp.le.s32.totalorder 2, %s33
      // Predicated region
      $region97: #{tpu_custom_call.1} parent=5 // pred_check
        %p1386 = pneg %p1385
      $region98: #{tpu_custom_call.1} parent=5 // pred_check_branch
        %1388 = sbr.rel (%p1386) target = $region100
      $region99: #{tpu_custom_call.1} parent=5 // pred_region
        %s1389 = ssub.s32 %s33, 2
        // Predicated region
        $region101: #{tpu_custom_call.1} parent=99 // pred_check
          %p1390 = pneg %p282
        $region102: #{tpu_custom_call.1} parent=99 // pred_check_branch
          %1392 = sbr.rel (%p1390) target = $region104
        $region103: #{tpu_custom_call.1} parent=99 // pred_region
          %s1393 = sand.u32 %s267, 1
          %s1394 = scalar_lea.sflag [#allocation4], %s1393
          %s1395 = sand.u32 %s267, 1
          %s1396 = smul.addr %s1395, 32
          %s1397 = scalar_lea.vmem [#allocation13], %s1396
          %1398 = dma.done %s1394, 512
        $region104: #{tpu_custom_call.1} parent=99 // pred_fallthru
          _
        // Predicated region
        $region105: #{tpu_custom_call.1} parent=99 // pred_check
          %p1399 = pneg %p308
        $region106: #{tpu_custom_call.1} parent=99 // pred_check_branch
          %1401 = sbr.rel (%p1399) target = $region108
        $region107: #{tpu_custom_call.1} parent=99 // pred_region
          %s1402 = sand.u32 %s293, 1
          %s1403 = scalar_lea.sflag [#allocation15], %s1402
          %s1404 = sand.u32 %s293, 1
          %s1405 = smul.addr %s1404, 16
          %s1406 = scalar_lea.vmem [#allocation14], %s1405
          %1407 = dma.done %s1403, 256
        $region108: #{tpu_custom_call.1} parent=99 // pred_fallthru
          _
        // Predicated region
        $region109: #{tpu_custom_call.1} parent=99 // pred_check
          %p1408 = pneg %p334
        $region110: #{tpu_custom_call.1} parent=99 // pred_check_branch
          %1410 = sbr.rel (%p1408) target = $region112
        $region111: #{tpu_custom_call.1} parent=99 // pred_region
          %s1411 = smul.u32 2, %s39
          %p1412 = scmp.lt.s32.totalorder %s1411, 7
          %s1413 = scalar_select %p1412, %s1411, 7
          %s1414 = smul.addr %s1413, 2
          %s1415 = smul.addr %s1414, 8
          %s1416 = scalar_lea.vmem %s12, %s1415
        $region112: #{tpu_custom_call.1} parent=99 // pred_fallthru
          _
      $region100: #{tpu_custom_call.1} parent=5 // pred_fallthru
        _
    $region6: #{tpu_custom_call.1} parent=1 // loop_footer
      %s37 = sadd.s32 1, %s33
    $region7: #{tpu_custom_call.1} parent=1 // loop_footer_branch
      %32 = sbr.rel target = $region3
    $region8: #{tpu_custom_call.1} parent=1 // loop_exit
      _
    %1417 = vsyncpa [#allocation3], 1
    %s1418 = scalar_lea.sflag [#allocation3], 1
    %1419 = vsyncpa %s1418, 1
    %1420 = vsyncpa [#allocation6], 1
    %s1421 = scalar_lea.sflag [#allocation6], 1
    %1422 = vsyncpa %s1421, 1
    %1423 = vsyncpa [#allocation9], 1
    %1424 = vsyncpa [#allocation12], 1
    %1425 = vsyncpa [#allocation4], 1
    %s1426 = scalar_lea.sflag [#allocation4], 1
    %1427 = vsyncpa %s1426, 1
    %1428 = vsyncpa [#allocation15], 1
    %s1429 = scalar_lea.sflag [#allocation15], 1
    %1430 = vsyncpa %s1429, 1

</llo_original>
